<compile_context>
chip_gen: v7x
topology: tpu7x:2x2x1
jax: 0.10.0
libtpu: 0.0.40
codegen_flags: <defaults>
</compile_context>

<pallas_src>
import jax
import jax.numpy as jnp
from jax import lax
from jax.experimental import pallas as pl
from jax.experimental.pallas import tpu as pltpu

NUM_CLUSTERS = 8      # NetVLAD(num_clusters=8, ...)
DIM = 512             # NetVLAD(dim=512, ...)
ALPHA = 10.0          # NetVLAD(alpha=10.0, ...)
EPS = 1e-12           # torch.nn.functional.normalize default eps


def _netvlad_kernel(x_ref, wimg_ref, bimg_ref, csc_ref, cent_ref, abias_ref,
                    out_ref, acc_vlad, acc_asum):
    """Grid = (batch, P-tiles).  One P tile per step, accumulate into VMEM scratch.

    x_ref    : (1, C_in, TP)  input positions (channel-first, as stored in HBM)
    wimg_ref : (C_in, DIM)    image_model stand-in 1x1-conv weight, bf16
    bimg_ref : (1, DIM)       image_model stand-in bias, f32
    csc_ref  : (K, DIM)       2*alpha*centroids, bf16 (logits matmul operand)
    cent_ref : (K, DIM)       centroids, f32 (final residual subtraction)
    abias_ref: (K, 1)         soft-assignment conv bias (= -alpha * ||c_k||), f32
    out_ref  : (1, K, DIM)    un-flattened VLAD descriptor (written on last P tile)
    acc_vlad : (K, DIM)  f32  scratch: sum_p a[k,p] * feat_n[p,:]
    acc_asum : (K, 128)  f32  scratch: sum_p a[k,p]  (lane-broadcast, col 0 used)
    """
    pt = pl.program_id(1)

    @pl.when(pt == 0)
    def _():
        acc_vlad[...] = jnp.zeros_like(acc_vlad)
        acc_asum[...] = jnp.zeros_like(acc_asum)

    x_t = x_ref[0]                                              # (C_in, TP)

    # ---- image_model stand-in: 1x1 conv == per-position linear C_in -> DIM ----
    # Weight is pre-cast bf16 in the wrapper; only the streamed input tile is cast
    # here (no-op if the producer already emits bf16 activations).  Contraction
    # over dim 0 of both operands: the transposed LHS is free on the MXU, so the
    # natural NCHW layout needs no wrapper-side transpose pass over HBM.
    feat = lax.dot_general(
        x_t.astype(jnp.bfloat16), wimg_ref[...],
        (((0,), (0,)), ((), ())),
        preferred_element_type=jnp.float32)                     # (TP, DIM) f32
    feat = feat + bimg_ref[...]

    # ---- descriptor-wise L2 normalization over channels (rsqrt form) ----------
    # Single bf16 materialization of feat_n, reused by both matmuls below.
    ssq = jnp.sum(feat * feat, axis=-1, keepdims=True)          # (TP, 1) f32
    feat_n_b = (feat * lax.rsqrt(jnp.maximum(ssq, EPS * EPS))
                ).astype(jnp.bfloat16)                          # (TP, DIM) bf16

    # ---- soft assignment in the lane-dense (K, TP) layout ---------------------
    # logits[k, p] = 2*alpha*<feat_n[p], c_k> + bias_k.  The 2*alpha scale is
    # folded into csc_ref in the wrapper.  (If exact f32-parity with the PyTorch
    # module is required, this tiny (K,DIM)x(DIM,TP) matmul can be kept in f32 —
    # it is ~1/64 of the projection FLOPs.)
    logits = lax.dot_general(
        csc_ref[...], feat_n_b,
        (((1,), (1,)), ((), ())),
        preferred_element_type=jnp.float32)                     # (K, TP) f32
    logits = logits + abias_ref[...]                            # (K,1) broadcast
    m = jnp.max(logits, axis=0, keepdims=True)                  # (1, TP) sublane reduce
    e = jnp.exp(logits - m)
    denom = jnp.sum(e, axis=0, keepdims=True)                   # (1, TP)
    a = e * pl.reciprocal(denom, approx=True)                   # softmax over K (EUP)

    # ---- partial VLAD aggregation for this P tile ------------------------------
    # vlad[k,c] = sum_p a[k,p]*(feat_n[p,c] - c_k[c])
    #           = (a @ feat_n)[k,c] - c_k[c] * sum_p a[k,p]   (subtract at the end)
    acc_vlad[...] += lax.dot_general(
        a.astype(jnp.bfloat16), feat_n_b,
        (((1,), (0,)), ((), ())),
        preferred_element_type=jnp.float32)                     # (K, DIM)
    # (K,1) lane-reduce broadcast into the lane-wide scratch: unmasked full store.
    acc_asum[...] += jnp.sum(a, axis=1, keepdims=True)

    @pl.when(pt == pl.num_programs(1) - 1)
    def _():
        a_sum = acc_asum[:, 0:1]                                # (K, 1)
        vlad = acc_vlad[...] - cent_ref[...] * a_sum            # (K, DIM) f32
        # intra-normalization (per cluster, over DIM)
        ssq_k = jnp.sum(vlad * vlad, axis=-1, keepdims=True)
        vlad = vlad * lax.rsqrt(jnp.maximum(ssq_k, EPS * EPS))
        # global L2 normalization over the flattened (K*DIM,) vector
        ssq_g = jnp.sum(vlad * vlad)
        vlad = vlad * lax.rsqrt(jnp.maximum(ssq_g, EPS * EPS))
        out_ref[...] = vlad[None].astype(out_ref.dtype)


def _vmem_budget_bytes():
    """Chip-aware scoped-VMEM target (limit, not allocation)."""
    cap = None
    try:
        info = pltpu.get_tpu_info()
        cap = getattr(info, "vmem_capacity_bytes", None)
    except Exception:
        cap = None
    if cap is None or cap <= 0:
        cap = 64 << 20                      # conservative: assume v7x per-TC VMEM
    if cap <= (64 << 20):                   # v7x: leave >=24 MiB for Mosaic scratch
        return min(40 << 20, int(cap * 0.625))
    return min(96 << 20, int(cap * 0.75))   # v5e/v6e: 128 MiB physical, raise default


def _footprint_bytes(c_in, tp, x_itemsize, buffers=2):
    """Rough steady-state VMEM footprint estimate for a P tile of width tp."""
    f32, bf16 = 4, 2
    x_blk = buffers * c_in * tp * x_itemsize                     # pipelined input tile
    params = 2 * (c_in * DIM * bf16                              # w_img (bf16)
                  + DIM * f32                                    # b_img
                  + NUM_CLUSTERS * DIM * (bf16 + f32)            # 2a*cent bf16 + cent f32
                  + NUM_CLUSTERS * 128 * f32)                    # abias (lane padded)
    out_blk = 2 * NUM_CLUSTERS * DIM * f32
    scratch = (NUM_CLUSTERS * DIM + NUM_CLUSTERS * 128) * f32
    interm = (tp * DIM * (f32 + bf16)                            # feat f32 + feat_n bf16
              + 4 * NUM_CLUSTERS * tp * f32                      # logits/e/a (+bf16 copy)
              + tp * 128 * f32)                                  # ssq + slack
    return x_blk + params + out_blk + scratch + interm


def _choose_p_tile(p, c_in, x_itemsize, budget):
    """Single full-extent P block when it fits; else largest 256-aligned divisor
    (v6e/v7x MXU alignment), 128-aligned fallback, else full extent."""
    usable = int(budget * 0.6)              # headroom for Mosaic internal scratch
    if _footprint_bytes(c_in, p, x_itemsize) <= usable:
        return p                            # one tile: no per-step pipeline overhead
    for step in (256, 128):
        if p % step != 0:
            continue
        tp = min(p - step, 2048)
        tp -= tp % step
        while tp >= step:
            if p % tp == 0 and _footprint_bytes(c_in, tp, x_itemsize) <= usable:
                return tp
            tp -= step
    return p                                # odd P: single full-extent block


@jax.jit
def netvlad_forward(x_nchw, w_img, b_img, centroids, assign_bias):
    n, c_in, h, w = x_nchw.shape
    p = h * w
    x_cp = x_nchw.reshape(n, c_in, p)       # free reshape -- no HBM transpose pass

    # ---- constant operands prepared once per call (outside the grid loop) -----
    w_img_b = w_img.astype(jnp.bfloat16)                             # (C_in, DIM)
    b_img2 = b_img.reshape(1, DIM).astype(jnp.float32)               # (1, DIM)
    cent_scaled_b = (2.0 * ALPHA * centroids).astype(jnp.bfloat16)   # (K, DIM) logits op
    cent_f32 = centroids.astype(jnp.float32)                         # (K, DIM) residual
    abias2 = assign_bias.reshape(NUM_CLUSTERS, 1).astype(jnp.float32)

    budget = _vmem_budget_bytes()
    tp = _choose_p_tile(p, c_in, x_cp.dtype.itemsize, budget)
    if p % tp != 0:
        tp = p
    n_pt = p // tp

    out = pl.pallas_call(
        _netvlad_kernel,
        out_shape=jax.ShapeDtypeStruct((n, NUM_CLUSTERS, DIM), jnp.float32),
        grid_spec=pltpu.PrefetchScalarGridSpec(
            num_scalar_prefetch=0,
            grid=(n, n_pt),
            in_specs=[
                # NOTE: if profiling shows the input DMA exposed on v6e (f32
                # activations, C_in~512), add pipeline_mode=pl.Buffered(3) here
                # and/or accept bf16 activations from the producer.
                pl.BlockSpec((1, c_in, tp), lambda b, pt: (b, 0, pt)),
                pl.BlockSpec((c_in, DIM), lambda b, pt: (0, 0)),
                pl.BlockSpec((1, DIM), lambda b, pt: (0, 0)),
                pl.BlockSpec((NUM_CLUSTERS, DIM), lambda b, pt: (0, 0)),
                pl.BlockSpec((NUM_CLUSTERS, DIM), lambda b, pt: (0, 0)),
                pl.BlockSpec((NUM_CLUSTERS, 1), lambda b, pt: (0, 0)),
            ],
            out_specs=pl.BlockSpec((1, NUM_CLUSTERS, DIM), lambda b, pt: (b, 0, 0)),
            scratch_shapes=[
                pltpu.VMEM((NUM_CLUSTERS, DIM), jnp.float32),
                pltpu.VMEM((NUM_CLUSTERS, 128), jnp.float32),
            ],
        ),
        compiler_params=pltpu.CompilerParams(
            # batch axis parallel (v7x: 2 TCs shard N), P axis is a reduction.
            dimension_semantics=("parallel", "arbitrary"),
            vmem_limit_bytes=budget,
        ),
    )(x_cp, w_img_b, b_img2, cent_scaled_b, cent_f32, abias2)
    # flatten (N, K, DIM) -> (N, K*DIM), matching torch's vlad.view(N, -1) order.
    return out.reshape(n, NUM_CLUSTERS * DIM)


def netvlad_reference(x_nchw, w_img, b_img, centroids, assign_bias):
    """Pure-JAX f32 mirror of the PyTorch forward (for validation)."""
    n, c_in, h, w = x_nchw.shape
    p = h * w
    feat = jnp.einsum("nchw,cd->ndhw", x_nchw, w_img) + b_img[None, :, None, None]
    feat = feat.reshape(n, DIM, p)                                 # (N, C, P)
    feat_n = feat / jnp.maximum(jnp.linalg.norm(feat, axis=1, keepdims=True), EPS)
    logits = 2.0 * ALPHA * jnp.einsum("ncp,kc->nkp", feat_n, centroids)
    logits = logits + assign_bias[None, :, None]
    a = jax.nn.softmax(logits, axis=1)                             # (N, K, P)
    residual = feat_n[:, None, :, :] - centroids[None, :, :, None] # (N, K, C, P)
    residual = residual * a[:, :, None, :]
    vlad = residual.sum(-1)                                        # (N, K, C)
    vlad = vlad / jnp.maximum(jnp.linalg.norm(vlad, axis=2, keepdims=True), EPS)
    vlad = vlad.reshape(n, -1)
    vlad = vlad / jnp.maximum(jnp.linalg.norm(vlad, axis=1, keepdims=True), EPS)
    return vlad


if __name__ == "__main__":
    # Small deterministic example: batch=2, input channels=4, 16x16 spatial.
    N, C_IN, H, W = 2, 4, 16, 16

    key = jax.random.PRNGKey(0)
    k_cent, k_wimg, k_bimg, k_x = jax.random.split(key, 4)

    # NetVLAD params (centroids ~ torch.rand; conv bias as in _init_params:
    # -alpha * ||c_k||, matching the given PyTorch module).
    centroids = jax.random.uniform(k_cent, (NUM_CLUSTERS, DIM), jnp.float32)
    assign_bias = -ALPHA * jnp.linalg.norm(centroids, axis=1)      # (K,)

    # Deterministic image_model stand-in (1x1 conv projection C_IN -> DIM).
    w_img = 0.1 * jax.random.normal(k_wimg, (C_IN, DIM), jnp.float32)
    b_img = 0.1 * jax.random.normal(k_bimg, (DIM,), jnp.float32)

    x = jax.random.normal(k_x, (N, C_IN, H, W), jnp.float32)       # NCHW input

    out = netvlad_forward(x, w_img, b_img, centroids, assign_bias)
    out = jax.block_until_ready(out)

    ref = netvlad_reference(x, w_img, b_img, centroids, assign_bias)
    assert out.shape == (N, NUM_CLUSTERS * DIM) == (N, 4096)
    err = float(jnp.max(jnp.abs(out - ref)))
    assert err < 1e-2, err

    print("KERNEL_OK")
</pallas_src>

<mosaic_0001>
module attributes {stable_mosaic.version = 11 : i64} {
  func.func @_netvlad_kernel(%arg0: i32, %arg1: i32, %arg2: memref<1x4x256xf32, #tpu.memory_space<vmem>>, %arg3: memref<4x512xbf16, #tpu.memory_space<vmem>>, %arg4: memref<1x512xf32, #tpu.memory_space<vmem>>, %arg5: memref<8x512xbf16, #tpu.memory_space<vmem>>, %arg6: memref<8x512xf32, #tpu.memory_space<vmem>>, %arg7: memref<8x1xf32, #tpu.memory_space<vmem>>, %arg8: memref<1x8x512xf32, #tpu.memory_space<vmem>>, %arg9: memref<8x512xf32, #tpu.memory_space<vmem>>, %arg10: memref<8x128xf32, #tpu.memory_space<vmem>>) attributes {dimension_semantics = [#tpu.dimension_semantics<parallel>, #tpu.dimension_semantics<arbitrary>], iteration_bounds = array<i64: 2, 1>, scalar_prefetch = 0 : i64, scratch_operands = 2 : i64, tpu.core_type = #tpu.core_type<tc>, window_params = [{transform_indices = @transform_0, window_bounds = array<i64: 1, 4, 256>}, {pipeline_mode = #tpu.pipeline_mode<synchronous>, transform_indices = @transform_1, window_bounds = array<i64: 4, 512>}, {pipeline_mode = #tpu.pipeline_mode<synchronous>, transform_indices = @transform_2, window_bounds = array<i64: 1, 512>}, {pipeline_mode = #tpu.pipeline_mode<synchronous>, transform_indices = @transform_3, window_bounds = array<i64: 8, 512>}, {pipeline_mode = #tpu.pipeline_mode<synchronous>, transform_indices = @transform_4, window_bounds = array<i64: 8, 512>}, {pipeline_mode = #tpu.pipeline_mode<synchronous>, transform_indices = @transform_5, window_bounds = array<i64: 8, 1>}, {transform_indices = @transform_6, window_bounds = array<i64: 1, 8, 512>}]} {
    %c0_i32 = arith.constant 0 : i32
    %0 = arith.cmpi eq, %arg1, %c0_i32 : i32
    %1 = arith.extui %0 : i1 to i32
    %c0_i32_0 = arith.constant 0 : i32
    %2 = arith.cmpi ne, %1, %c0_i32_0 : i32
    scf.if %2 {
      %cst_28 = arith.constant 0.000000e+00 : f32
      %49 = vector.broadcast %cst_28 : f32 to vector<8x512xf32>
      %c0_29 = arith.constant 0 : index
      %c0_30 = arith.constant 0 : index
      %50 = vector.load %arg9[%c0_29, %c0_30] : memref<8x512xf32, #tpu.memory_space<vmem>>, vector<8x512xf32>
      tpu.vector_store %arg9[%c0_29, %c0_30], %49 {strides = array<i32>} : memref<8x512xf32, #tpu.memory_space<vmem>>, vector<8x512xf32>,
      %cst_31 = arith.constant 0.000000e+00 : f32
      %51 = vector.broadcast %cst_31 : f32 to vector<8x128xf32>
      %c0_32 = arith.constant 0 : index
      %c0_33 = arith.constant 0 : index
      %52 = vector.load %arg10[%c0_32, %c0_33] : memref<8x128xf32, #tpu.memory_space<vmem>>, vector<8x128xf32>
      tpu.vector_store %arg10[%c0_32, %c0_33], %51 {strides = array<i32>} : memref<8x128xf32, #tpu.memory_space<vmem>>, vector<8x128xf32>,
    } else {
    }
    %c0 = arith.constant 0 : index
    %c0_1 = arith.constant 0 : index
    %c0_2 = arith.constant 0 : index
    %3 = vector.load %arg2[%c0, %c0_1, %c0_2] : memref<1x4x256xf32, #tpu.memory_space<vmem>>, vector<1x4x256xf32>
    %4 = vector.shape_cast %3 : vector<1x4x256xf32> to vector<4x256xf32>
    %5 = arith.truncf %4 : vector<4x256xf32> to vector<4x256xbf16>
    %c0_3 = arith.constant 0 : index
    %c0_4 = arith.constant 0 : index
    %6 = vector.load %arg3[%c0_3, %c0_4] : memref<4x512xbf16, #tpu.memory_space<vmem>>, vector<4x512xbf16>
    %cst = arith.constant dense<0.000000e+00> : vector<256x512xf32>
    %7 = tpu.matmul %5, %6, %cst {dimension_numbers = #tpu.dot_dimension_numbers<[0], [0], [1], [1], [0, 1, 1, 1], [], []>} : vector<4x256xbf16>, vector<4x512xbf16>, vector<256x512xf32> -> vector<256x512xf32>
    %c0_5 = arith.constant 0 : index
    %c0_6 = arith.constant 0 : index
    %8 = vector.load %arg4[%c0_5, %c0_6] : memref<1x512xf32, #tpu.memory_space<vmem>>, vector<1x512xf32>
    %9 = vector.broadcast %8 : vector<1x512xf32> to vector<256x512xf32>
    %10 = arith.addf %7, %9 : vector<256x512xf32>
    %11 = arith.mulf %10, %10 : vector<256x512xf32>
    %cst_7 = arith.constant dense<0.000000e+00> : vector<256xf32>
    %12 = vector.multi_reduction <add>, %11, %cst_7 [1] : vector<256x512xf32> to vector<256xf32>
    %13 = vector.shape_cast %12 : vector<256xf32> to vector<256x1xf32>
    %cst_8 = arith.constant 1.000000e-24 : f32
    %14 = vector.broadcast %cst_8 : f32 to vector<256x1xf32>
    %15 = arith.maximumf %13, %14 : vector<256x1xf32>
    %16 = math.rsqrt %15 : vector<256x1xf32>
    %17 = vector.broadcast %16 : vector<256x1xf32> to vector<256x512xf32>
    %18 = arith.mulf %10, %17 : vector<256x512xf32>
    %19 = arith.truncf %18 : vector<256x512xf32> to vector<256x512xbf16>
    %c0_9 = arith.constant 0 : index
    %c0_10 = arith.constant 0 : index
    %20 = vector.load %arg5[%c0_9, %c0_10] : memref<8x512xbf16, #tpu.memory_space<vmem>>, vector<8x512xbf16>
    %cst_11 = arith.constant dense<0.000000e+00> : vector<8x256xf32>
    %21 = tpu.matmul %20, %19, %cst_11 {dimension_numbers = #tpu.dot_dimension_numbers<[1], [1], [0], [0], [0, 0, 1, 0], [], []>} : vector<8x512xbf16>, vector<256x512xbf16>, vector<8x256xf32> -> vector<8x256xf32>
    %c0_12 = arith.constant 0 : index
    %c0_13 = arith.constant 0 : index
    %22 = vector.load %arg7[%c0_12, %c0_13] : memref<8x1xf32, #tpu.memory_space<vmem>>, vector<8x1xf32>
    %23 = vector.broadcast %22 : vector<8x1xf32> to vector<8x256xf32>
    %24 = arith.addf %21, %23 : vector<8x256xf32>
    %cst_14 = arith.constant dense<0xFF800000> : vector<256xf32>
    %25 = vector.multi_reduction <maximumf>, %24, %cst_14 [0] : vector<8x256xf32> to vector<256xf32>
    %26 = vector.shape_cast %25 : vector<256xf32> to vector<1x256xf32>
    %27 = vector.broadcast %26 : vector<1x256xf32> to vector<8x256xf32>
    %28 = arith.subf %24, %27 : vector<8x256xf32>
    %29 = math.exp %28 : vector<8x256xf32>
    %cst_15 = arith.constant dense<0.000000e+00> : vector<256xf32>
    %30 = vector.multi_reduction <add>, %29, %cst_15 [0] : vector<8x256xf32> to vector<256xf32>
    %31 = vector.shape_cast %30 : vector<256xf32> to vector<1x256xf32>
    %32 = tpu.reciprocal %31 {approx = true} : vector<1x256xf32> -> vector<1x256xf32>
    %33 = vector.broadcast %32 : vector<1x256xf32> to vector<8x256xf32>
    %34 = arith.mulf %29, %33 : vector<8x256xf32>
    %c0_16 = arith.constant 0 : index
    %c0_17 = arith.constant 0 : index
    %35 = vector.load %arg9[%c0_16, %c0_17] : memref<8x512xf32, #tpu.memory_space<vmem>>, vector<8x512xf32>
    %36 = arith.truncf %34 : vector<8x256xf32> to vector<8x256xbf16>
    %cst_18 = arith.constant dense<0.000000e+00> : vector<8x512xf32>
    %37 = tpu.matmul %36, %19, %cst_18 {dimension_numbers = #tpu.dot_dimension_numbers<[1], [0], [0], [1], [0, 0, 1, 1], [], []>} : vector<8x256xbf16>, vector<256x512xbf16>, vector<8x512xf32> -> vector<8x512xf32>
    %38 = arith.addf %35, %37 : vector<8x512xf32>
    %c0_19 = arith.constant 0 : index
    %c0_20 = arith.constant 0 : index
    %39 = vector.load %arg9[%c0_19, %c0_20] : memref<8x512xf32, #tpu.memory_space<vmem>>, vector<8x512xf32>
    tpu.vector_store %arg9[%c0_19, %c0_20], %38 {strides = array<i32>} : memref<8x512xf32, #tpu.memory_space<vmem>>, vector<8x512xf32>,
    %c0_21 = arith.constant 0 : index
    %c0_22 = arith.constant 0 : index
    %40 = vector.load %arg10[%c0_21, %c0_22] : memref<8x128xf32, #tpu.memory_space<vmem>>, vector<8x128xf32>
    %cst_23 = arith.constant dense<0.000000e+00> : vector<8xf32>
    %41 = vector.multi_reduction <add>, %34, %cst_23 [1] : vector<8x256xf32> to vector<8xf32>
    %42 = vector.shape_cast %41 : vector<8xf32> to vector<8x1xf32>
    %43 = vector.broadcast %42 : vector<8x1xf32> to vector<8x128xf32>
    %44 = arith.addf %40, %43 : vector<8x128xf32>
    %c0_24 = arith.constant 0 : index
    %c0_25 = arith.constant 0 : index
    %45 = vector.load %arg10[%c0_24, %c0_25] : memref<8x128xf32, #tpu.memory_space<vmem>>, vector<8x128xf32>
    tpu.vector_store %arg10[%c0_24, %c0_25], %44 {strides = array<i32>} : memref<8x128xf32, #tpu.memory_space<vmem>>, vector<8x128xf32>,
    %c0_i32_26 = arith.constant 0 : i32
    %46 = arith.cmpi eq, %arg1, %c0_i32_26 : i32
    %47 = arith.extui %46 : i1 to i32
    %c0_i32_27 = arith.constant 0 : i32
    %48 = arith.cmpi ne, %47, %c0_i32_27 : i32
    scf.if %48 {
      %c0_28 = arith.constant 0 : index
      %c0_29 = arith.constant 0 : index
      %49 = vector.load %arg10[%c0_28, %c0_29] : memref<8x128xf32, #tpu.memory_space<vmem>>, vector<8x1xf32>
      %c0_30 = arith.constant 0 : index
      %c0_31 = arith.constant 0 : index
      %50 = vector.load %arg9[%c0_30, %c0_31] : memref<8x512xf32, #tpu.memory_space<vmem>>, vector<8x512xf32>
      %c0_32 = arith.constant 0 : index
      %c0_33 = arith.constant 0 : index
      %51 = vector.load %arg6[%c0_32, %c0_33] : memref<8x512xf32, #tpu.memory_space<vmem>>, vector<8x512xf32>
      %52 = vector.broadcast %49 : vector<8x1xf32> to vector<8x512xf32>
      %53 = arith.mulf %51, %52 : vector<8x512xf32>
      %54 = arith.subf %50, %53 : vector<8x512xf32>
      %55 = arith.mulf %54, %54 : vector<8x512xf32>
      %cst_34 = arith.constant dense<0.000000e+00> : vector<8xf32>
      %56 = vector.multi_reduction <add>, %55, %cst_34 [1] : vector<8x512xf32> to vector<8xf32>
      %57 = vector.shape_cast %56 : vector<8xf32> to vector<8x1xf32>
      %cst_35 = arith.constant 1.000000e-24 : f32
      %58 = vector.broadcast %cst_35 : f32 to vector<8x1xf32>
      %59 = arith.maximumf %57, %58 : vector<8x1xf32>
      %60 = math.rsqrt %59 : vector<8x1xf32>
      %61 = vector.broadcast %60 : vector<8x1xf32> to vector<8x512xf32>
      %62 = arith.mulf %54, %61 : vector<8x512xf32>
      %63 = arith.mulf %62, %62 : vector<8x512xf32>
      %64 = vector.shape_cast %63 : vector<8x512xf32> to vector<1x8x512xf32>
      %cst_36 = arith.constant dense<0.000000e+00> : vector<1xf32>
      %65 = vector.multi_reduction <add>, %64, %cst_36 [1, 2] : vector<1x8x512xf32> to vector<1xf32>
      %66 = vector.shape_cast %65 : vector<1xf32> to vector<1x1x1xf32>
      %67 = vector.extract %66[0, 0, 0] : f32 from vector<1x1x1xf32>
      %cst_37 = arith.constant 1.000000e-24 : f32
      %68 = arith.maximumf %67, %cst_37 : f32
      %69 = math.rsqrt %68 : f32
      %70 = vector.broadcast %69 : f32 to vector<8x512xf32>
      %71 = arith.mulf %62, %70 : vector<8x512xf32>
      %72 = vector.shape_cast %71 : vector<8x512xf32> to vector<1x8x512xf32>
      %c0_38 = arith.constant 0 : index
      %c0_39 = arith.constant 0 : index
      %c0_40 = arith.constant 0 : index
      %73 = vector.load %arg8[%c0_38, %c0_39, %c0_40] : memref<1x8x512xf32, #tpu.memory_space<vmem>>, vector<1x8x512xf32>
      tpu.vector_store %arg8[%c0_38, %c0_39, %c0_40], %72 {strides = array<i32>} : memref<1x8x512xf32, #tpu.memory_space<vmem>>, vector<1x8x512xf32>,
    } else {
    }
    return
  }
  func.func @transform_0(%arg0: i32, %arg1: i32) -> (i32, i32, i32) {
    %c0_i32 = arith.constant 0 : i32
    %c0_i32_0 = arith.constant 0 : i32
    return %arg0, %c0_i32, %arg1 : i32, i32, i32
  }
  func.func @transform_1(%arg0: i32, %arg1: i32) -> (i32, i32) {
    %c0_i32 = arith.constant 0 : i32
    %c0_i32_0 = arith.constant 0 : i32
    %c0_i32_1 = arith.constant 0 : i32
    return %c0_i32, %c0_i32_0 : i32, i32
  }
  func.func @transform_2(%arg0: i32, %arg1: i32) -> (i32, i32) {
    %c0_i32 = arith.constant 0 : i32
    %c0_i32_0 = arith.constant 0 : i32
    %c0_i32_1 = arith.constant 0 : i32
    return %c0_i32, %c0_i32_0 : i32, i32
  }
  func.func @transform_3(%arg0: i32, %arg1: i32) -> (i32, i32) {
    %c0_i32 = arith.constant 0 : i32
    %c0_i32_0 = arith.constant 0 : i32
    %c0_i32_1 = arith.constant 0 : i32
    return %c0_i32, %c0_i32_0 : i32, i32
  }
  func.func @transform_4(%arg0: i32, %arg1: i32) -> (i32, i32) {
    %c0_i32 = arith.constant 0 : i32
    %c0_i32_0 = arith.constant 0 : i32
    %c0_i32_1 = arith.constant 0 : i32
    return %c0_i32, %c0_i32_0 : i32, i32
  }
  func.func @transform_5(%arg0: i32, %arg1: i32) -> (i32, i32) {
    %c0_i32 = arith.constant 0 : i32
    %c0_i32_0 = arith.constant 0 : i32
    %c0_i32_1 = arith.constant 0 : i32
    return %c0_i32, %c0_i32_0 : i32, i32
  }
  func.func @transform_6(%arg0: i32, %arg1: i32) -> (i32, i32, i32) {
    %c0_i32 = arith.constant 0 : i32
    %c0_i32_0 = arith.constant 0 : i32
    %c0_i32_1 = arith.constant 0 : i32
    return %arg0, %c0_i32, %c0_i32_0 : i32, i32, i32
  }
}

</mosaic_0001>

<llo_original>
// kernel: netvlad_forward.1
$region0: #{netvlad_forward.1}
  #allocation0 [shape = 'u32[]', space=smem, size = 0x4, offset = 0x4, fixed_abs, tag = 'smem constant byte address 0x4 - core index']
  #allocation1 [shape = 'u32[144,128]{1,0:T(1,128)}', space=vmem, size = 0x12000, scoped, tag = 'internal scratch']
  #allocation2 [shape = 'f32[8,512]{1,0:T(8,128)}', space=vmem, size = 0x4000, scoped, tag = 'scratch operand']
  #allocation3 [shape = 'f32[8,128]{1,0:T(8,128)}', space=vmem, size = 0x1000, scoped, tag = 'scratch operand']
  %s0 = inlined_call_operand.vmem [shape: f32[2,4,256], index: 0, kind: input, shape index: {}]
  %s1 = inlined_call_operand.vmem [shape: bf16[4,512], index: 1, kind: input, shape index: {}]
  %s2 = inlined_call_operand.vmem [shape: f32[1,512], index: 2, kind: input, shape index: {}]
  %s3 = inlined_call_operand.vmem [shape: bf16[8,512], index: 3, kind: input, shape index: {}]
  %s4 = inlined_call_operand.vmem [shape: f32[8,512], index: 4, kind: input, shape index: {}]
  %s5 = inlined_call_operand.vmem [shape: f32[8,1], index: 5, kind: input, shape index: {}]
  %s6 = inlined_call_operand.vmem [shape: f32[2,8,512], index: 6, kind: output, shape index: {}]
  %s7 = sld [smem:[#allocation0]]
  $region65: #{netvlad_forward.1} parent=0
    _
  %s9 = ssub.s32 1, %s7
  %s10 = scalar_select 0, %s9, %s7
  loop: start=0, step=1, limit=4
  $region2: #{netvlad_forward.1} parent=0 // loop_pre_header
    _
  $region3: #{netvlad_forward.1} parent=0 // loop_header
    %s12 = sphi 0, %s16
    %p13 = scmp.ge.s32.totalorder %s12, 4
    %s19 = sphi 0, %s31
    %s20 = sphi 0, %s27
    %s21 = sphi 0, %s19
    %s22 = sphi 0, %s20
    %s23 = sphi 0, %s21
    %s24 = sphi 0, %s22
    %s36 = sphi 0, %s38
    %s39 = sphi 0, %s36
    %s40 = sphi 0, %s39
    %s56 = sphi 0, %s40
    %s60 = sphi 0, %s60
    %s62 = sphi 0, %s60
    %s63 = sphi 0, %s62
    %s77 = sphi 0, %s63
    %s81 = sphi 0, %s81
    %s83 = sphi 0, %s81
    %s84 = sphi 0, %s83
    %s98 = sphi 0, %s84
    %s102 = sphi 0, %s102
    %s104 = sphi 0, %s102
    %s105 = sphi 0, %s104
    %s119 = sphi 0, %s105
    %s123 = sphi 0, %s123
    %s125 = sphi 0, %s123
    %s126 = sphi 0, %s125
    %s140 = sphi 0, %s126
    %s144 = sphi 0, %s144
    %s146 = sphi 0, %s144
    %s147 = sphi 0, %s146
    %s161 = sphi 0, %s147
    %s167 = sphi 0, %s169
    %s170 = sphi 0, %s167
    %s171 = sphi 0, %s170
    %s187 = sphi 0, %s171
  $region4: #{netvlad_forward.1} parent=0 // loop_header_branch
    %15 = sbr.rel (%p13) target = $region8
  $region5: #{netvlad_forward.1} parent=0 // loop_body
    %s17 = ssub.s32 %s12, 1
    %s18 = ssub.s32 %s12, 2
    %s25 = sadd.s32 1, %s20
    %p26 = scmp.ge.s32.totalorder %s25, 1
    %s27 = scalar_select %p26, 0, %s25
    %s28 = sadd.s32 1, %s19
    %s29 = scalar_select %p26, %s28, %s19
    %p30 = scmp.ge.s32.totalorder %s29, 2
    %s31 = scalar_select %p30, 0, %s29
    %s32 = ssub.s32 %s19, %s31
    %s33 = ssub.s32 %s20, %s27
    %s34 = sor.u32 %s32, %s33
    %p35 = scmp.eq.s32.totalorder %s34, 0
    %s37 = sadd.s32 %s36, 1
    %s38 = scalar_select %p35, %s36, %s37
    %p41 = pneg %p35
    %p42 = scmp.eq.s32.totalorder %s12, 1
    %p43 = por %p41, %p42
    %p44 = scmp.ne.s32.totalorder %s36, %s39
    %p45 = scmp.eq.s32.totalorder %s12, 0
    %p46 = por %p44, %p45
    %p47 = scmp.ne.s32.totalorder %s36, %s39
    %p48 = scmp.eq.s32.totalorder %s17, 1
    %p49 = por %p47, %p48
    %p50 = scmp.ne.s32.totalorder %s39, %s40
    %p51 = scmp.eq.s32.totalorder %s17, 0
    %p52 = por %p50, %p51
    %p53 = scmp.ne.s32.totalorder %s39, %s40
    %p54 = scmp.eq.s32.totalorder %s18, 1
    %p55 = por %p53, %p54
    %p57 = scmp.ne.s32.totalorder %s40, %s56
    %p58 = scmp.eq.s32.totalorder %s18, 0
    %p59 = por %p57, %p58
    %s61 = sadd.s32 %s60, 1
    %p64 = scmp.eq.s32.totalorder %s12, 1
    %p65 = scmp.ne.s32.totalorder %s60, %s62
    %p66 = scmp.eq.s32.totalorder %s12, 0
    %p67 = por %p65, %p66
    %p68 = scmp.ne.s32.totalorder %s60, %s62
    %p69 = scmp.eq.s32.totalorder %s17, 1
    %p70 = por %p68, %p69
    %p71 = scmp.ne.s32.totalorder %s62, %s63
    %p72 = scmp.eq.s32.totalorder %s17, 0
    %p73 = por %p71, %p72
    %p74 = scmp.ne.s32.totalorder %s62, %s63
    %p75 = scmp.eq.s32.totalorder %s18, 1
    %p76 = por %p74, %p75
    %p78 = scmp.ne.s32.totalorder %s63, %s77
    %p79 = scmp.eq.s32.totalorder %s18, 0
    %p80 = por %p78, %p79
    %s82 = sadd.s32 %s81, 1
    %p85 = scmp.eq.s32.totalorder %s12, 1
    %p86 = scmp.ne.s32.totalorder %s81, %s83
    %p87 = scmp.eq.s32.totalorder %s12, 0
    %p88 = por %p86, %p87
    %p89 = scmp.ne.s32.totalorder %s81, %s83
    %p90 = scmp.eq.s32.totalorder %s17, 1
    %p91 = por %p89, %p90
    %p92 = scmp.ne.s32.totalorder %s83, %s84
    %p93 = scmp.eq.s32.totalorder %s17, 0
    %p94 = por %p92, %p93
    %p95 = scmp.ne.s32.totalorder %s83, %s84
    %p96 = scmp.eq.s32.totalorder %s18, 1
    %p97 = por %p95, %p96
    %p99 = scmp.ne.s32.totalorder %s84, %s98
    %p100 = scmp.eq.s32.totalorder %s18, 0
    %p101 = por %p99, %p100
    %s103 = sadd.s32 %s102, 1
    %p106 = scmp.eq.s32.totalorder %s12, 1
    %p107 = scmp.ne.s32.totalorder %s102, %s104
    %p108 = scmp.eq.s32.totalorder %s12, 0
    %p109 = por %p107, %p108
    %p110 = scmp.ne.s32.totalorder %s102, %s104
    %p111 = scmp.eq.s32.totalorder %s17, 1
    %p112 = por %p110, %p111
    %p113 = scmp.ne.s32.totalorder %s104, %s105
    %p114 = scmp.eq.s32.totalorder %s17, 0
    %p115 = por %p113, %p114
    %p116 = scmp.ne.s32.totalorder %s104, %s105
    %p117 = scmp.eq.s32.totalorder %s18, 1
    %p118 = por %p116, %p117
    %p120 = scmp.ne.s32.totalorder %s105, %s119
    %p121 = scmp.eq.s32.totalorder %s18, 0
    %p122 = por %p120, %p121
    %s124 = sadd.s32 %s123, 1
    %p127 = scmp.eq.s32.totalorder %s12, 1
    %p128 = scmp.ne.s32.totalorder %s123, %s125
    %p129 = scmp.eq.s32.totalorder %s12, 0
    %p130 = por %p128, %p129
    %p131 = scmp.ne.s32.totalorder %s123, %s125
    %p132 = scmp.eq.s32.totalorder %s17, 1
    %p133 = por %p131, %p132
    %p134 = scmp.ne.s32.totalorder %s125, %s126
    %p135 = scmp.eq.s32.totalorder %s17, 0
    %p136 = por %p134, %p135
    %p137 = scmp.ne.s32.totalorder %s125, %s126
    %p138 = scmp.eq.s32.totalorder %s18, 1
    %p139 = por %p137, %p138
    %p141 = scmp.ne.s32.totalorder %s126, %s140
    %p142 = scmp.eq.s32.totalorder %s18, 0
    %p143 = por %p141, %p142
    %s145 = sadd.s32 %s144, 1
    %p148 = scmp.eq.s32.totalorder %s12, 1
    %p149 = scmp.ne.s32.totalorder %s144, %s146
    %p150 = scmp.eq.s32.totalorder %s12, 0
    %p151 = por %p149, %p150
    %p152 = scmp.ne.s32.totalorder %s144, %s146
    %p153 = scmp.eq.s32.totalorder %s17, 1
    %p154 = por %p152, %p153
    %p155 = scmp.ne.s32.totalorder %s146, %s147
    %p156 = scmp.eq.s32.totalorder %s17, 0
    %p157 = por %p155, %p156
    %p158 = scmp.ne.s32.totalorder %s146, %s147
    %p159 = scmp.eq.s32.totalorder %s18, 1
    %p160 = por %p158, %p159
    %p162 = scmp.ne.s32.totalorder %s147, %s161
    %p163 = scmp.eq.s32.totalorder %s18, 0
    %p164 = por %p162, %p163
    %s165 = ssub.s32 %s19, %s31
    %p166 = scmp.eq.s32.totalorder %s165, 0
    %s168 = sadd.s32 %s167, 1
    %s169 = scalar_select %p166, %s167, %s168
    %p172 = pneg %p166
    %p173 = scmp.eq.s32.totalorder %s12, 1
    %p174 = por %p172, %p173
    %p175 = scmp.ne.s32.totalorder %s167, %s170
    %p176 = scmp.eq.s32.totalorder %s12, 0
    %p177 = por %p175, %p176
    %p178 = scmp.ne.s32.totalorder %s167, %s170
    %p179 = scmp.eq.s32.totalorder %s17, 1
    %p180 = por %p178, %p179
    %p181 = scmp.ne.s32.totalorder %s170, %s171
    %p182 = scmp.eq.s32.totalorder %s17, 0
    %p183 = por %p181, %p182
    %p184 = scmp.ne.s32.totalorder %s170, %s171
    %p185 = scmp.eq.s32.totalorder %s18, 1
    %p186 = por %p184, %p185
    %p188 = scmp.ne.s32.totalorder %s171, %s187
    %p189 = scmp.eq.s32.totalorder %s18, 0
    %p190 = por %p188, %p189
    %p191 = scmp.le.s32.totalorder 1, %s12
    %p192 = scmp.lt.s32.totalorder %s12, 3
    %p193 = pnand %p191, %p192
    %p194 = pneg %p193
    // Predicated region
    $region9: #{netvlad_forward.1} parent=5 // pred_check
      _
    $region10: #{netvlad_forward.1} parent=5 // pred_check_branch
      %196 = sbr.rel (%p193) target = $region12
    $region11: #{netvlad_forward.1} parent=5 // pred_region
      %s197 = ssub.s32 %s12, 1
      // Predicated region
      $region13: #{netvlad_forward.1} parent=11 // pred_check
        %p198 = pneg %p73
      $region14: #{netvlad_forward.1} parent=11 // pred_check_branch
        %200 = sbr.rel (%p198) target = $region16
      $region15: #{netvlad_forward.1} parent=11 // pred_region
        _
      $region16: #{netvlad_forward.1} parent=11 // pred_fallthru
        _
      // Predicated region
      $region17: #{netvlad_forward.1} parent=11 // pred_check
        %p201 = pneg %p94
      $region18: #{netvlad_forward.1} parent=11 // pred_check_branch
        %203 = sbr.rel (%p201) target = $region20
      $region19: #{netvlad_forward.1} parent=11 // pred_region
        _
      $region20: #{netvlad_forward.1} parent=11 // pred_fallthru
        _
      // Predicated region
      $region21: #{netvlad_forward.1} parent=11 // pred_check
        %p204 = pneg %p115
      $region22: #{netvlad_forward.1} parent=11 // pred_check_branch
        %206 = sbr.rel (%p204) target = $region24
      $region23: #{netvlad_forward.1} parent=11 // pred_region
        _
      $region24: #{netvlad_forward.1} parent=11 // pred_fallthru
        _
      // Predicated region
      $region25: #{netvlad_forward.1} parent=11 // pred_check
        %p207 = pneg %p136
      $region26: #{netvlad_forward.1} parent=11 // pred_check_branch
        %209 = sbr.rel (%p207) target = $region28
      $region27: #{netvlad_forward.1} parent=11 // pred_region
        _
      $region28: #{netvlad_forward.1} parent=11 // pred_fallthru
        _
      // Predicated region
      $region29: #{netvlad_forward.1} parent=11 // pred_check
        %p210 = pneg %p157
      $region30: #{netvlad_forward.1} parent=11 // pred_check_branch
        %212 = sbr.rel (%p210) target = $region32
      $region31: #{netvlad_forward.1} parent=11 // pred_region
        _
      $region32: #{netvlad_forward.1} parent=11 // pred_fallthru
        _
    $region12: #{netvlad_forward.1} parent=5 // pred_fallthru
      _
    %p213 = scmp.lt.s32.totalorder %s12, 2
    // Predicated region
    $region33: #{netvlad_forward.1} parent=5 // pred_check
      %p214 = pneg %p213
    $region34: #{netvlad_forward.1} parent=5 // pred_check_branch
      %216 = sbr.rel (%p214) target = $region36
    $region35: #{netvlad_forward.1} parent=5 // pred_region
      // Predicated region
      $region37: #{netvlad_forward.1} parent=35 // pred_check
        %p217 = pneg %p46
      $region38: #{netvlad_forward.1} parent=35 // pred_check_branch
        %219 = sbr.rel (%p217) target = $region40
      $region39: #{netvlad_forward.1} parent=35 // pred_region
        %s220 = smul.u32 2, %s20
        %p221 = scmp.lt.s32.totalorder %s19, 1
        %s222 = scalar_select %p221, %s19, 1
        %p223 = scmp.lt.s32.totalorder %s220, 1
        %s224 = scalar_select %p223, %s220, 1
        %s225 = smul.addr %s222, 2
        %s226 = sadd.s32 %s224, %s225
        %s227 = smul.addr %s226, 4
        %s228 = scalar_lea.vmem %s0, %s227
        %s229 = smul.u32 2, %s20
      $region40: #{netvlad_forward.1} parent=35 // pred_fallthru
        _
    $region36: #{netvlad_forward.1} parent=5 // pred_fallthru
      _
    %p230 = scmp.le.s32.totalorder 1, %s12
    %p231 = scmp.lt.s32.totalorder %s12, 3
    %p232 = pnand %p230, %p231
    %p233 = pneg %p232
    // Predicated region
    $region41: #{netvlad_forward.1} parent=5 // pred_check
      _
    $region42: #{netvlad_forward.1} parent=5 // pred_check_branch
      %235 = sbr.rel (%p232) target = $region44
    $region43: #{netvlad_forward.1} parent=5 // pred_region
      %s236 = ssub.s32 %s12, 1
      %s237 = smul.u32 2, %s22
      %p238 = scmp.lt.s32.totalorder %s21, 1
      %s239 = scalar_select %p238, %s21, 1
      %p240 = scmp.lt.s32.totalorder %s237, 1
      %s241 = scalar_select %p240, %s237, 1
      %s242 = smul.addr %s239, 2
      %s243 = sadd.s32 %s241, %s242
      %s244 = smul.addr %s243, 4
      %s245 = scalar_lea.vmem %s0, %s244
      %p246 = pneg %p52
      %p247 = pneg %p49
      %p248 = pneg %p73
      %p249 = pneg %p70
      %p250 = pneg %p94
      %p251 = pneg %p91
      %p252 = pneg %p115
      %p253 = pneg %p112
      %p254 = pneg %p136
      %p255 = pneg %p133
      %p256 = pneg %p157
      %p257 = pneg %p154
      %p258 = pneg %p183
      %p259 = pneg %p180
      %p260 = scmp.lt.s32.totalorder %s21, 1
      %s261 = scalar_select %p260, %s21, 1
      %s262 = smul.addr %s261, 4
      %s263 = smul.addr %s262, 8
      %s264 = scalar_lea.vmem %s6, %s263
      %s265 = smul.u32 2, %s22
      %p266 = scmp.lt.s32.totalorder %s21, 1
      %s267 = scalar_select %p266, %s21, 1
      %p268 = scmp.lt.s32.totalorder %s265, 1
      %s269 = scalar_select %p268, %s265, 1
      %s270 = smul.addr %s267, 2
      %s271 = sadd.s32 %s269, %s270
      %s272 = smul.addr %s271, 4
      %s273 = scalar_lea.vmem %s0, %s272
      %s274 = smul.u32 2, %s22
      %p275 = scmp.lt.s32.totalorder %s21, 1
      %s276 = scalar_select %p275, %s21, 1
      %s277 = smul.addr %s276, 4
      %s278 = smul.addr %s277, 8
      %s279 = scalar_lea.vmem %s6, %s278
      %p281 = scmp.eq.s32.totalorder %s22, 0
      // Predicated region
      $region45: #{netvlad_forward.1} parent=43 // pred_check
        %p282 = pneg %p281
      $region46: #{netvlad_forward.1} parent=43 // pred_check_branch
        %284 = sbr.rel (%p282) target = $region48
      $region47: #{netvlad_forward.1} parent=43 // pred_region
        %285 = vst [vmem:[#allocation2] sm:$0xff] 0.0
        %286 = vst [vmem:[#allocation2 + $0x8] sm:$0xff] 0.0
        %287 = vst [vmem:[#allocation2 + $0x10] sm:$0xff] 0.0
        %288 = vst [vmem:[#allocation2 + $0x18] sm:$0xff] 0.0
        %289 = vst [vmem:[#allocation3] sm:$0xff] 0.0
      $region48: #{netvlad_forward.1} parent=43 // pred_fallthru
        _
      %v290 = vld [vmem:[%s273] sm:$0xff]
      %v292 = vcombine.high %v290, %v290
      %v294 = vpack.c.bf16 %v290, %v290
      %v295 = vpack.c.bf16 %v292, %v292
      %v296 = vld [vmem:[%s1] sm:$0xff]
      %v297 = vld [vmem:[%s2] sm:$0xf]
      %v299 = vlaneseq
      %v300 = vshrl.u32 %v299, 7
      %v301 = vsub.s32 0, %v300
      %v302 = vrot.slane %v297, %v301
      %v303 = vlaneseq
      %v304 = vshrl.u32 %v303, 7
      %v305 = vsub.s32 1, %v304
      %v306 = vrot.slane %v297, %v305
      %v307 = vlaneseq
      %v308 = vshrl.u32 %v307, 7
      %v309 = vsub.s32 2, %v308
      %v310 = vrot.slane %v297, %v309
      %v311 = vlaneseq
      %v312 = vshrl.u32 %v311, 7
      %v313 = vsub.s32 3, %v312
      %v314 = vrot.slane %v297, %v313
      %319 = vxpose.xlu0.c.b16.start [1/8] %v294, 128
      %320 = vxpose.xlu0.c.b16.cont [2/8] 0, 128
      %321 = vxpose.xlu0.c.b16.cont [3/8] 0, 128
      %322 = vxpose.xlu0.c.b16.cont [4/8] 0, 128
      %323 = vxpose.xlu0.c.b16.cont [5/8] 0, 128
      %324 = vxpose.xlu0.c.b16.cont [6/8] 0, 128
      %325 = vxpose.xlu0.c.b16.cont [7/8] 0, 128
      %326 = vxpose.xlu0.c.b16.end [8/8] 0, 128
      %v327 = vpop.trf.xlu0
      %v328 = vpop.trf.xlu0
      %v329 = vpop.trf.xlu0
      %v330 = vpop.trf.xlu0
      %v331 = vpop.trf.xlu0
      %v332 = vpop.trf.xlu0
      %v333 = vpop.trf.xlu0
      %v334 = vpop.trf.xlu0
      %335 = vxpose.xlu0.c.b16.start [1/8] %v295, 128
      %336 = vxpose.xlu0.c.b16.cont [2/8] 0, 128
      %337 = vxpose.xlu0.c.b16.cont [3/8] 0, 128
      %338 = vxpose.xlu0.c.b16.cont [4/8] 0, 128
      %339 = vxpose.xlu0.c.b16.cont [5/8] 0, 128
      %340 = vxpose.xlu0.c.b16.cont [6/8] 0, 128
      %341 = vxpose.xlu0.c.b16.cont [7/8] 0, 128
      %342 = vxpose.xlu0.c.b16.end [8/8] 0, 128
      %v343 = vpop.trf.xlu0
      %v344 = vpop.trf.xlu0
      %v345 = vpop.trf.xlu0
      %v346 = vpop.trf.xlu0
      %v347 = vpop.trf.xlu0
      %v348 = vpop.trf.xlu0
      %v349 = vpop.trf.xlu0
      %v350 = vpop.trf.xlu0
      %v352 = vcombine.high %v296, %v296
      %v354 = vunpack.c.l.s4 1983009808
      %v355 = vunpack.c.0.s8 %v354
      %v356 = vlaneseq
      %v357 = vshrl.u32 %v356, 7
      %v358 = vsub.s32 %v355, %v357
      %v359 = vrot.slane %v296, %v358
      %v361 = vunpack.c.l.s4 1983009808
      %v362 = vunpack.c.0.s8 %v361
      %v363 = vlaneseq
      %v364 = vshrl.u32 %v363, 7
      %v365 = vsub.s32 %v362, %v364
      %v366 = vrot.slane %v352, %v365
      %v367 = vcombine.high %v359, %v359
      %v368 = vcombine.high %v366, %v366
      %vm369 = vcmask 31744
      %v371 = vsel %vm369, %v327, 0
      %v374 = vsel %vm369, %v328, 0
      %v377 = vsel %vm369, %v329, 0
      %v380 = vsel %vm369, %v330, 0
      %v383 = vsel %vm369, %v331, 0
      %v386 = vsel %vm369, %v332, 0
      %v389 = vsel %vm369, %v333, 0
      %v392 = vsel %vm369, %v334, 0
      %v395 = vsel %vm369, %v343, 0
      %v398 = vsel %vm369, %v344, 0
      %v401 = vsel %vm369, %v345, 0
      %v404 = vsel %vm369, %v346, 0
      %v407 = vsel %vm369, %v347, 0
      %v410 = vsel %vm369, %v348, 0
      %v413 = vsel %vm369, %v349, 0
      %v416 = vsel %vm369, %v350, 0
      %vm418 = vcmask 1041408
      %v420 = vsel %vm418, %v359, 0
      %v423 = vsel %vm418, %v367, 0
      %v426 = vsel %vm418, %v366, 0
      %v429 = vsel %vm418, %v368, 0
      %431 = vmatprep.subr.bf16.mxu0 %v423
      %432 = vmatpush1.bf16.msra.mxu0 %v420
      %433 = vmatprep.subr.bf16.mxu0 0
      %434 = vmatpush1.bf16.msra.mxu0 0
      %435 = vmatprep.subr.bf16.mxu0 0
      %436 = vmatpush1.bf16.msra.mxu0 0
      %437 = vmatprep.subr.bf16.mxu0 0
      %438 = vmatpush1.bf16.msra.mxu0 0
      %439 = vmatprep.subr.bf16.mxu0 0
      %440 = vmatpush1.bf16.msra.mxu0 0
      %441 = vmatprep.subr.bf16.mxu0 0
      %442 = vmatpush1.bf16.msra.mxu0 0
      %443 = vmatprep.subr.bf16.mxu0 0
      %444 = vmatpush1.bf16.msra.mxu0 0
      %445 = vmatprep.subr.bf16.mxu0 0
      %446 = vmatpush1.bf16.msra.mxu0 0
      %447 = vmatprep.subr.bf16.mxu0 0
      %448 = vmatpush1.bf16.msra.mxu0 0
      %449 = vmatprep.subr.bf16.mxu0 0
      %450 = vmatpush1.bf16.msra.mxu0 0
      %451 = vmatprep.subr.bf16.mxu0 0
      %452 = vmatpush1.bf16.msra.mxu0 0
      %453 = vmatprep.subr.bf16.mxu0 0
      %454 = vmatpush1.bf16.msra.mxu0 0
      %455 = vmatprep.subr.bf16.mxu0 0
      %456 = vmatpush1.bf16.msra.mxu0 0
      %457 = vmatprep.subr.bf16.mxu0 0
      %458 = vmatpush1.bf16.msra.mxu0 0
      %459 = vmatprep.subr.bf16.mxu0 0
      %460 = vmatpush1.bf16.msra.mxu0 0
      %461 = vmatprep.subr.bf16.mxu0 0
      %462 = vmatpush1.bf16.msra.mxu0 0
      %463 = vmatprep.mubr.bf16.mxu0 0
      %464 = vmatmul.mubr.bf16.gmra.mrb[0].mxu0 %v371
      %v465 = vpop.f32.mrb[0].mxu0
      %v466 = vadd.f32 %v302, %v465
      %v467 = vpop.f32.mrb[0].mxu0
      %v468 = vadd.f32 %v306, %v467
      %v469 = vpop.f32.mrb[0].mxu0
      %v470 = vadd.f32 %v302, %v469
      %v471 = vpop.f32.mrb[0].mxu0
      %v472 = vadd.f32 %v306, %v471
      %473 = vmatprep.mubr.bf16.mxu0 0
      %474 = vmatmul.mubr.bf16.gmra.mrb[0].mxu0 %v374
      %v475 = vpop.f32.mrb[0].mxu0
      %v476 = vadd.f32 %v302, %v475
      %v477 = vpop.f32.mrb[0].mxu0
      %v478 = vadd.f32 %v306, %v477
      %v479 = vpop.f32.mrb[0].mxu0
      %v480 = vadd.f32 %v302, %v479
      %v481 = vpop.f32.mrb[0].mxu0
      %v482 = vadd.f32 %v306, %v481
      %483 = vmatprep.mubr.bf16.mxu0 0
      %484 = vmatmul.mubr.bf16.gmra.mrb[0].mxu0 %v377
      %v485 = vpop.f32.mrb[0].mxu0
      %v486 = vadd.f32 %v302, %v485
      %v487 = vpop.f32.mrb[0].mxu0
      %v488 = vadd.f32 %v306, %v487
      %v489 = vpop.f32.mrb[0].mxu0
      %v490 = vadd.f32 %v302, %v489
      %v491 = vpop.f32.mrb[0].mxu0
      %v492 = vadd.f32 %v306, %v491
      %493 = vmatprep.mubr.bf16.mxu0 0
      %494 = vmatmul.mubr.bf16.gmra.mrb[0].mxu0 %v380
      %v495 = vpop.f32.mrb[0].mxu0
      %v496 = vadd.f32 %v302, %v495
      %v497 = vpop.f32.mrb[0].mxu0
      %v498 = vadd.f32 %v306, %v497
      %v499 = vpop.f32.mrb[0].mxu0
      %v500 = vadd.f32 %v302, %v499
      %v501 = vpop.f32.mrb[0].mxu0
      %v502 = vadd.f32 %v306, %v501
      %503 = vmatprep.mubr.bf16.mxu0 0
      %504 = vmatmul.mubr.bf16.gmra.mrb[0].mxu0 %v383
      %v505 = vpop.f32.mrb[0].mxu0
      %v506 = vadd.f32 %v302, %v505
      %v507 = vpop.f32.mrb[0].mxu0
      %v508 = vadd.f32 %v306, %v507
      %v509 = vpop.f32.mrb[0].mxu0
      %v510 = vadd.f32 %v302, %v509
      %v511 = vpop.f32.mrb[0].mxu0
      %v512 = vadd.f32 %v306, %v511
      %513 = vmatprep.mubr.bf16.mxu0 0
      %514 = vmatmul.mubr.bf16.gmra.mrb[0].mxu0 %v386
      %v515 = vpop.f32.mrb[0].mxu0
      %v516 = vadd.f32 %v302, %v515
      %v517 = vpop.f32.mrb[0].mxu0
      %v518 = vadd.f32 %v306, %v517
      %v519 = vpop.f32.mrb[0].mxu0
      %v520 = vadd.f32 %v302, %v519
      %v521 = vpop.f32.mrb[0].mxu0
      %v522 = vadd.f32 %v306, %v521
      %523 = vmatprep.mubr.bf16.mxu0 0
      %524 = vmatmul.mubr.bf16.gmra.mrb[0].mxu0 %v389
      %v525 = vpop.f32.mrb[0].mxu0
      %v526 = vadd.f32 %v302, %v525
      %v527 = vpop.f32.mrb[0].mxu0
      %v528 = vadd.f32 %v306, %v527
      %v529 = vpop.f32.mrb[0].mxu0
      %v530 = vadd.f32 %v302, %v529
      %v531 = vpop.f32.mrb[0].mxu0
      %v532 = vadd.f32 %v306, %v531
      %533 = vmatprep.mubr.bf16.mxu0 0
      %534 = vmatmul.mubr.bf16.gmra.mrb[0].mxu0 %v392
      %v535 = vpop.f32.mrb[0].mxu0
      %v536 = vadd.f32 %v302, %v535
      %v537 = vpop.f32.mrb[0].mxu0
      %v538 = vadd.f32 %v306, %v537
      %v539 = vpop.f32.mrb[0].mxu0
      %v540 = vadd.f32 %v302, %v539
      %v541 = vpop.f32.mrb[0].mxu0
      %v542 = vadd.f32 %v306, %v541
      %543 = vmatprep.mubr.bf16.mxu0 0
      %544 = vmatmul.mubr.bf16.gmra.mrb[0].mxu0 %v395
      %v545 = vpop.f32.mrb[0].mxu0
      %v546 = vadd.f32 %v302, %v545
      %v547 = vpop.f32.mrb[0].mxu0
      %v548 = vadd.f32 %v306, %v547
      %v549 = vpop.f32.mrb[0].mxu0
      %v550 = vadd.f32 %v302, %v549
      %v551 = vpop.f32.mrb[0].mxu0
      %v552 = vadd.f32 %v306, %v551
      %553 = vmatprep.mubr.bf16.mxu0 0
      %554 = vmatmul.mubr.bf16.gmra.mrb[0].mxu0 %v398
      %v555 = vpop.f32.mrb[0].mxu0
      %v556 = vadd.f32 %v302, %v555
      %v557 = vpop.f32.mrb[0].mxu0
      %v558 = vadd.f32 %v306, %v557
      %v559 = vpop.f32.mrb[0].mxu0
      %v560 = vadd.f32 %v302, %v559
      %v561 = vpop.f32.mrb[0].mxu0
      %v562 = vadd.f32 %v306, %v561
      %563 = vmatprep.mubr.bf16.mxu0 0
      %564 = vmatmul.mubr.bf16.gmra.mrb[0].mxu0 %v401
      %v565 = vpop.f32.mrb[0].mxu0
      %v566 = vadd.f32 %v302, %v565
      %v567 = vpop.f32.mrb[0].mxu0
      %v568 = vadd.f32 %v306, %v567
      %v569 = vpop.f32.mrb[0].mxu0
      %v570 = vadd.f32 %v302, %v569
      %v571 = vpop.f32.mrb[0].mxu0
      %v572 = vadd.f32 %v306, %v571
      %573 = vmatprep.mubr.bf16.mxu0 0
      %574 = vmatmul.mubr.bf16.gmra.mrb[0].mxu0 %v404
      %v575 = vpop.f32.mrb[0].mxu0
      %v576 = vadd.f32 %v302, %v575
      %v577 = vpop.f32.mrb[0].mxu0
      %v578 = vadd.f32 %v306, %v577
      %v579 = vpop.f32.mrb[0].mxu0
      %v580 = vadd.f32 %v302, %v579
      %v581 = vpop.f32.mrb[0].mxu0
      %v582 = vadd.f32 %v306, %v581
      %583 = vmatprep.mubr.bf16.mxu0 0
      %584 = vmatmul.mubr.bf16.gmra.mrb[0].mxu0 %v407
      %v585 = vpop.f32.mrb[0].mxu0
      %v586 = vadd.f32 %v302, %v585
      %v587 = vpop.f32.mrb[0].mxu0
      %v588 = vadd.f32 %v306, %v587
      %v589 = vpop.f32.mrb[0].mxu0
      %v590 = vadd.f32 %v302, %v589
      %v591 = vpop.f32.mrb[0].mxu0
      %v592 = vadd.f32 %v306, %v591
      %593 = vmatprep.mubr.bf16.mxu0 0
      %594 = vmatmul.mubr.bf16.gmra.mrb[0].mxu0 %v410
      %v595 = vpop.f32.mrb[0].mxu0
      %v596 = vadd.f32 %v302, %v595
      %v597 = vpop.f32.mrb[0].mxu0
      %v598 = vadd.f32 %v306, %v597
      %v599 = vpop.f32.mrb[0].mxu0
      %v600 = vadd.f32 %v302, %v599
      %v601 = vpop.f32.mrb[0].mxu0
      %v602 = vadd.f32 %v306, %v601
      %603 = vmatprep.mubr.bf16.mxu0 0
      %604 = vmatmul.mubr.bf16.gmra.mrb[0].mxu0 %v413
      %v605 = vpop.f32.mrb[0].mxu0
      %v606 = vadd.f32 %v302, %v605
      %v607 = vpop.f32.mrb[0].mxu0
      %v608 = vadd.f32 %v306, %v607
      %v609 = vpop.f32.mrb[0].mxu0
      %v610 = vadd.f32 %v302, %v609
      %v611 = vpop.f32.mrb[0].mxu0
      %v612 = vadd.f32 %v306, %v611
      %613 = vmatprep.mubr.bf16.mxu0 0
      %614 = vmatmul.mubr.bf16.gmra.mrb[0].mxu0 %v416
      %v615 = vpop.f32.mrb[0].mxu0
      %v616 = vadd.f32 %v302, %v615
      %v617 = vpop.f32.mrb[0].mxu0
      %v618 = vadd.f32 %v306, %v617
      %v619 = vpop.f32.mrb[0].mxu0
      %v620 = vadd.f32 %v302, %v619
      %v621 = vpop.f32.mrb[0].mxu0
      %v622 = vadd.f32 %v306, %v621
      %623 = vdwg.mxu0
      %624 = vmatprep.subr.bf16.mxu0 %v429
      %625 = vmatpush1.bf16.msra.mxu0 %v426
      %626 = vmatprep.subr.bf16.mxu0 0
      %627 = vmatpush1.bf16.msra.mxu0 0
      %628 = vmatprep.subr.bf16.mxu0 0
      %629 = vmatpush1.bf16.msra.mxu0 0
      %630 = vmatprep.subr.bf16.mxu0 0
      %631 = vmatpush1.bf16.msra.mxu0 0
      %632 = vmatprep.subr.bf16.mxu0 0
      %633 = vmatpush1.bf16.msra.mxu0 0
      %634 = vmatprep.subr.bf16.mxu0 0
      %635 = vmatpush1.bf16.msra.mxu0 0
      %636 = vmatprep.subr.bf16.mxu0 0
      %637 = vmatpush1.bf16.msra.mxu0 0
      %638 = vmatprep.subr.bf16.mxu0 0
      %639 = vmatpush1.bf16.msra.mxu0 0
      %640 = vmatprep.subr.bf16.mxu0 0
      %641 = vmatpush1.bf16.msra.mxu0 0
      %642 = vmatprep.subr.bf16.mxu0 0
      %643 = vmatpush1.bf16.msra.mxu0 0
      %644 = vmatprep.subr.bf16.mxu0 0
      %645 = vmatpush1.bf16.msra.mxu0 0
      %646 = vmatprep.subr.bf16.mxu0 0
      %647 = vmatpush1.bf16.msra.mxu0 0
      %648 = vmatprep.subr.bf16.mxu0 0
      %649 = vmatpush1.bf16.msra.mxu0 0
      %650 = vmatprep.subr.bf16.mxu0 0
      %651 = vmatpush1.bf16.msra.mxu0 0
      %652 = vmatprep.subr.bf16.mxu0 0
      %653 = vmatpush1.bf16.msra.mxu0 0
      %654 = vmatprep.subr.bf16.mxu0 0
      %655 = vmatpush1.bf16.msra.mxu0 0
      %656 = vmatprep.mubr.bf16.mxu0 0
      %657 = vmatmul.mubr.bf16.gmra.mrb[0].mxu0 %v371
      %v658 = vpop.f32.mrb[0].mxu0
      %v659 = vadd.f32 %v310, %v658
      %v660 = vpop.f32.mrb[0].mxu0
      %v661 = vadd.f32 %v314, %v660
      %v662 = vpop.f32.mrb[0].mxu0
      %v663 = vadd.f32 %v310, %v662
      %v664 = vpop.f32.mrb[0].mxu0
      %v665 = vadd.f32 %v314, %v664
      %666 = vmatprep.mubr.bf16.mxu0 0
      %667 = vmatmul.mubr.bf16.gmra.mrb[0].mxu0 %v374
      %v668 = vpop.f32.mrb[0].mxu0
      %v669 = vadd.f32 %v310, %v668
      %v670 = vpop.f32.mrb[0].mxu0
      %v671 = vadd.f32 %v314, %v670
      %v672 = vpop.f32.mrb[0].mxu0
      %v673 = vadd.f32 %v310, %v672
      %v674 = vpop.f32.mrb[0].mxu0
      %v675 = vadd.f32 %v314, %v674
      %676 = vmatprep.mubr.bf16.mxu0 0
      %677 = vmatmul.mubr.bf16.gmra.mrb[0].mxu0 %v377
      %v678 = vpop.f32.mrb[0].mxu0
      %v679 = vadd.f32 %v310, %v678
      %v680 = vpop.f32.mrb[0].mxu0
      %v681 = vadd.f32 %v314, %v680
      %v682 = vpop.f32.mrb[0].mxu0
      %v683 = vadd.f32 %v310, %v682
      %v684 = vpop.f32.mrb[0].mxu0
      %v685 = vadd.f32 %v314, %v684
      %686 = vmatprep.mubr.bf16.mxu0 0
      %687 = vmatmul.mubr.bf16.gmra.mrb[0].mxu0 %v380
      %v688 = vpop.f32.mrb[0].mxu0
      %v689 = vadd.f32 %v310, %v688
      %v690 = vpop.f32.mrb[0].mxu0
      %v691 = vadd.f32 %v314, %v690
      %v692 = vpop.f32.mrb[0].mxu0
      %v693 = vadd.f32 %v310, %v692
      %v694 = vpop.f32.mrb[0].mxu0
      %v695 = vadd.f32 %v314, %v694
      %696 = vmatprep.mubr.bf16.mxu0 0
      %697 = vmatmul.mubr.bf16.gmra.mrb[0].mxu0 %v383
      %v698 = vpop.f32.mrb[0].mxu0
      %v699 = vadd.f32 %v310, %v698
      %v700 = vpop.f32.mrb[0].mxu0
      %v701 = vadd.f32 %v314, %v700
      %v702 = vpop.f32.mrb[0].mxu0
      %v703 = vadd.f32 %v310, %v702
      %v704 = vpop.f32.mrb[0].mxu0
      %v705 = vadd.f32 %v314, %v704
      %706 = vmatprep.mubr.bf16.mxu0 0
      %707 = vmatmul.mubr.bf16.gmra.mrb[0].mxu0 %v386
      %v708 = vpop.f32.mrb[0].mxu0
      %v709 = vadd.f32 %v310, %v708
      %v710 = vpop.f32.mrb[0].mxu0
      %v711 = vadd.f32 %v314, %v710
      %v712 = vpop.f32.mrb[0].mxu0
      %v713 = vadd.f32 %v310, %v712
      %v714 = vpop.f32.mrb[0].mxu0
      %v715 = vadd.f32 %v314, %v714
      %716 = vmatprep.mubr.bf16.mxu0 0
      %717 = vmatmul.mubr.bf16.gmra.mrb[0].mxu0 %v389
      %v718 = vpop.f32.mrb[0].mxu0
      %v719 = vadd.f32 %v310, %v718
      %v720 = vpop.f32.mrb[0].mxu0
      %v721 = vadd.f32 %v314, %v720
      %v722 = vpop.f32.mrb[0].mxu0
      %v723 = vadd.f32 %v310, %v722
      %v724 = vpop.f32.mrb[0].mxu0
      %v725 = vadd.f32 %v314, %v724
      %726 = vmatprep.mubr.bf16.mxu0 0
      %727 = vmatmul.mubr.bf16.gmra.mrb[0].mxu0 %v392
      %v728 = vpop.f32.mrb[0].mxu0
      %v729 = vadd.f32 %v310, %v728
      %v730 = vpop.f32.mrb[0].mxu0
      %v731 = vadd.f32 %v314, %v730
      %v732 = vpop.f32.mrb[0].mxu0
      %v733 = vadd.f32 %v310, %v732
      %v734 = vpop.f32.mrb[0].mxu0
      %v735 = vadd.f32 %v314, %v734
      %736 = vmatprep.mubr.bf16.mxu0 0
      %737 = vmatmul.mubr.bf16.gmra.mrb[0].mxu0 %v395
      %v738 = vpop.f32.mrb[0].mxu0
      %v739 = vadd.f32 %v310, %v738
      %v740 = vpop.f32.mrb[0].mxu0
      %v741 = vadd.f32 %v314, %v740
      %v742 = vpop.f32.mrb[0].mxu0
      %v743 = vadd.f32 %v310, %v742
      %v744 = vpop.f32.mrb[0].mxu0
      %v745 = vadd.f32 %v314, %v744
      %746 = vmatprep.mubr.bf16.mxu0 0
      %747 = vmatmul.mubr.bf16.gmra.mrb[0].mxu0 %v398
      %v748 = vpop.f32.mrb[0].mxu0
      %v749 = vadd.f32 %v310, %v748
      %v750 = vpop.f32.mrb[0].mxu0
      %v751 = vadd.f32 %v314, %v750
      %v752 = vpop.f32.mrb[0].mxu0
      %v753 = vadd.f32 %v310, %v752
      %v754 = vpop.f32.mrb[0].mxu0
      %v755 = vadd.f32 %v314, %v754
      %756 = vmatprep.mubr.bf16.mxu0 0
      %757 = vmatmul.mubr.bf16.gmra.mrb[0].mxu0 %v401
      %v758 = vpop.f32.mrb[0].mxu0
      %v759 = vadd.f32 %v310, %v758
      %v760 = vpop.f32.mrb[0].mxu0
      %v761 = vadd.f32 %v314, %v760
      %v762 = vpop.f32.mrb[0].mxu0
      %v763 = vadd.f32 %v310, %v762
      %v764 = vpop.f32.mrb[0].mxu0
      %v765 = vadd.f32 %v314, %v764
      %766 = vmatprep.mubr.bf16.mxu0 0
      %767 = vmatmul.mubr.bf16.gmra.mrb[0].mxu0 %v404
      %v768 = vpop.f32.mrb[0].mxu0
      %v769 = vadd.f32 %v310, %v768
      %v770 = vpop.f32.mrb[0].mxu0
      %v771 = vadd.f32 %v314, %v770
      %v772 = vpop.f32.mrb[0].mxu0
      %v773 = vadd.f32 %v310, %v772
      %v774 = vpop.f32.mrb[0].mxu0
      %v775 = vadd.f32 %v314, %v774
      %776 = vmatprep.mubr.bf16.mxu0 0
      %777 = vmatmul.mubr.bf16.gmra.mrb[0].mxu0 %v407
      %v778 = vpop.f32.mrb[0].mxu0
      %v779 = vadd.f32 %v310, %v778
      %v780 = vpop.f32.mrb[0].mxu0
      %v781 = vadd.f32 %v314, %v780
      %v782 = vpop.f32.mrb[0].mxu0
      %v783 = vadd.f32 %v310, %v782
      %v784 = vpop.f32.mrb[0].mxu0
      %v785 = vadd.f32 %v314, %v784
      %786 = vmatprep.mubr.bf16.mxu0 0
      %787 = vmatmul.mubr.bf16.gmra.mrb[0].mxu0 %v410
      %v788 = vpop.f32.mrb[0].mxu0
      %v789 = vadd.f32 %v310, %v788
      %v790 = vpop.f32.mrb[0].mxu0
      %v791 = vadd.f32 %v314, %v790
      %v792 = vpop.f32.mrb[0].mxu0
      %v793 = vadd.f32 %v310, %v792
      %v794 = vpop.f32.mrb[0].mxu0
      %v795 = vadd.f32 %v314, %v794
      %796 = vmatprep.mubr.bf16.mxu0 0
      %797 = vmatmul.mubr.bf16.gmra.mrb[0].mxu0 %v413
      %v798 = vpop.f32.mrb[0].mxu0
      %v799 = vadd.f32 %v310, %v798
      %v800 = vpop.f32.mrb[0].mxu0
      %v801 = vadd.f32 %v314, %v800
      %v802 = vpop.f32.mrb[0].mxu0
      %v803 = vadd.f32 %v310, %v802
      %v804 = vpop.f32.mrb[0].mxu0
      %v805 = vadd.f32 %v314, %v804
      %806 = vmatprep.mubr.bf16.mxu0 0
      %807 = vmatmul.mubr.bf16.gmra.mrb[0].mxu0 %v416
      %v808 = vpop.f32.mrb[0].mxu0
      %v809 = vadd.f32 %v310, %v808
      %v810 = vpop.f32.mrb[0].mxu0
      %v811 = vadd.f32 %v314, %v810
      %v812 = vpop.f32.mrb[0].mxu0
      %v813 = vadd.f32 %v310, %v812
      %v814 = vpop.f32.mrb[0].mxu0
      %v815 = vadd.f32 %v314, %v814
      %816 = vdwg.mxu0
      %v817 = vmul.f32 %v466, %v466
      %v818 = vmul.f32 %v468, %v468
      %v819 = vmul.f32 %v659, %v659
      %v820 = vmul.f32 %v661, %v661
      %v821 = vmul.f32 %v470, %v470
      %v822 = vmul.f32 %v472, %v472
      %v823 = vmul.f32 %v663, %v663
      %v824 = vmul.f32 %v665, %v665
      %v825 = vmul.f32 %v476, %v476
      %v826 = vmul.f32 %v478, %v478
      %v827 = vmul.f32 %v669, %v669
      %v828 = vmul.f32 %v671, %v671
      %v829 = vmul.f32 %v480, %v480
      %v830 = vmul.f32 %v482, %v482
      %v831 = vmul.f32 %v673, %v673
      %v832 = vmul.f32 %v675, %v675
      %v833 = vmul.f32 %v486, %v486
      %v834 = vmul.f32 %v488, %v488
      %v835 = vmul.f32 %v679, %v679
      %v836 = vmul.f32 %v681, %v681
      %v837 = vmul.f32 %v490, %v490
      %v838 = vmul.f32 %v492, %v492
      %v839 = vmul.f32 %v683, %v683
      %v840 = vmul.f32 %v685, %v685
      %v841 = vmul.f32 %v496, %v496
      %v842 = vmul.f32 %v498, %v498
      %v843 = vmul.f32 %v689, %v689
      %v844 = vmul.f32 %v691, %v691
      %v845 = vmul.f32 %v500, %v500
      %v846 = vmul.f32 %v502, %v502
      %v847 = vmul.f32 %v693, %v693
      %v848 = vmul.f32 %v695, %v695
      %v849 = vmul.f32 %v506, %v506
      %v850 = vmul.f32 %v508, %v508
      %v851 = vmul.f32 %v699, %v699
      %v852 = vmul.f32 %v701, %v701
      %v853 = vmul.f32 %v510, %v510
      %v854 = vmul.f32 %v512, %v512
      %v855 = vmul.f32 %v703, %v703
      %v856 = vmul.f32 %v705, %v705
      %v857 = vmul.f32 %v516, %v516
      %v858 = vmul.f32 %v518, %v518
      %v859 = vmul.f32 %v709, %v709
      %v860 = vmul.f32 %v711, %v711
      %v861 = vmul.f32 %v520, %v520
      %v862 = vmul.f32 %v522, %v522
      %v863 = vmul.f32 %v713, %v713
      %v864 = vmul.f32 %v715, %v715
      %v865 = vmul.f32 %v526, %v526
      %v866 = vmul.f32 %v528, %v528
      %v867 = vmul.f32 %v719, %v719
      %v868 = vmul.f32 %v721, %v721
      %v869 = vmul.f32 %v530, %v530
      %v870 = vmul.f32 %v532, %v532
      %v871 = vmul.f32 %v723, %v723
      %v872 = vmul.f32 %v725, %v725
      %v873 = vmul.f32 %v536, %v536
      %v874 = vmul.f32 %v538, %v538
      %v875 = vmul.f32 %v729, %v729
      %v876 = vmul.f32 %v731, %v731
      %v877 = vmul.f32 %v540, %v540
      %v878 = vmul.f32 %v542, %v542
      %v879 = vmul.f32 %v733, %v733
      %v880 = vmul.f32 %v735, %v735
      %v881 = vmul.f32 %v546, %v546
      %v882 = vmul.f32 %v548, %v548
      %v883 = vmul.f32 %v739, %v739
      %v884 = vmul.f32 %v741, %v741
      %v885 = vmul.f32 %v550, %v550
      %v886 = vmul.f32 %v552, %v552
      %v887 = vmul.f32 %v743, %v743
      %v888 = vmul.f32 %v745, %v745
      %v889 = vmul.f32 %v556, %v556
      %v890 = vmul.f32 %v558, %v558
      %v891 = vmul.f32 %v749, %v749
      %v892 = vmul.f32 %v751, %v751
      %v893 = vmul.f32 %v560, %v560
      %v894 = vmul.f32 %v562, %v562
      %v895 = vmul.f32 %v753, %v753
      %v896 = vmul.f32 %v755, %v755
      %v897 = vmul.f32 %v566, %v566
      %v898 = vmul.f32 %v568, %v568
      %v899 = vmul.f32 %v759, %v759
      %v900 = vmul.f32 %v761, %v761
      %v901 = vmul.f32 %v570, %v570
      %v902 = vmul.f32 %v572, %v572
      %v903 = vmul.f32 %v763, %v763
      %v904 = vmul.f32 %v765, %v765
      %v905 = vmul.f32 %v576, %v576
      %v906 = vmul.f32 %v578, %v578
      %v907 = vmul.f32 %v769, %v769
      %v908 = vmul.f32 %v771, %v771
      %v909 = vmul.f32 %v580, %v580
      %v910 = vmul.f32 %v582, %v582
      %v911 = vmul.f32 %v773, %v773
      %v912 = vmul.f32 %v775, %v775
      %v913 = vmul.f32 %v586, %v586
      %v914 = vmul.f32 %v588, %v588
      %v915 = vmul.f32 %v779, %v779
      %v916 = vmul.f32 %v781, %v781
      %v917 = vmul.f32 %v590, %v590
      %v918 = vmul.f32 %v592, %v592
      %v919 = vmul.f32 %v783, %v783
      %v920 = vmul.f32 %v785, %v785
      %v921 = vmul.f32 %v596, %v596
      %v922 = vmul.f32 %v598, %v598
      %v923 = vmul.f32 %v789, %v789
      %v924 = vmul.f32 %v791, %v791
      %v925 = vmul.f32 %v600, %v600
      %v926 = vmul.f32 %v602, %v602
      %v927 = vmul.f32 %v793, %v793
      %v928 = vmul.f32 %v795, %v795
      %v929 = vmul.f32 %v606, %v606
      %v930 = vmul.f32 %v608, %v608
      %v931 = vmul.f32 %v799, %v799
      %v932 = vmul.f32 %v801, %v801
      %v933 = vmul.f32 %v610, %v610
      %v934 = vmul.f32 %v612, %v612
      %v935 = vmul.f32 %v803, %v803
      %v936 = vmul.f32 %v805, %v805
      %v937 = vmul.f32 %v616, %v616
      %v938 = vmul.f32 %v618, %v618
      %v939 = vmul.f32 %v809, %v809
      %v940 = vmul.f32 %v811, %v811
      %v941 = vmul.f32 %v620, %v620
      %v942 = vmul.f32 %v622, %v622
      %v943 = vmul.f32 %v813, %v813
      %v944 = vmul.f32 %v815, %v815
      %v945 = vadd.f32 %v817, %v818
      %v946 = vadd.f32 %v945, %v819
      %v947 = vadd.f32 %v946, %v820
      %948 = vadd.xlane.f32.xlu0 %v947
      %v949 = vpop.xlane.xlu0 %948
      %v950 = vadd.f32 %v821, %v822
      %v951 = vadd.f32 %v950, %v823
      %v952 = vadd.f32 %v951, %v824
      %953 = vadd.xlane.f32.xlu0 %v952
      %v954 = vpop.xlane.xlu0 %953
      %v955 = vadd.f32 %v825, %v826
      %v956 = vadd.f32 %v955, %v827
      %v957 = vadd.f32 %v956, %v828
      %958 = vadd.xlane.f32.xlu0 %v957
      %v959 = vpop.xlane.xlu0 %958
      %v960 = vadd.f32 %v829, %v830
      %v961 = vadd.f32 %v960, %v831
      %v962 = vadd.f32 %v961, %v832
      %963 = vadd.xlane.f32.xlu0 %v962
      %v964 = vpop.xlane.xlu0 %963
      %v965 = vadd.f32 %v833, %v834
      %v966 = vadd.f32 %v965, %v835
      %v967 = vadd.f32 %v966, %v836
      %968 = vadd.xlane.f32.xlu0 %v967
      %v969 = vpop.xlane.xlu0 %968
      %v970 = vadd.f32 %v837, %v838
      %v971 = vadd.f32 %v970, %v839
      %v972 = vadd.f32 %v971, %v840
      %973 = vadd.xlane.f32.xlu0 %v972
      %v974 = vpop.xlane.xlu0 %973
      %v975 = vadd.f32 %v841, %v842
      %v976 = vadd.f32 %v975, %v843
      %v977 = vadd.f32 %v976, %v844
      %978 = vadd.xlane.f32.xlu0 %v977
      %v979 = vpop.xlane.xlu0 %978
      %v980 = vadd.f32 %v845, %v846
      %v981 = vadd.f32 %v980, %v847
      %v982 = vadd.f32 %v981, %v848
      %983 = vadd.xlane.f32.xlu0 %v982
      %v984 = vpop.xlane.xlu0 %983
      %v985 = vadd.f32 %v849, %v850
      %v986 = vadd.f32 %v985, %v851
      %v987 = vadd.f32 %v986, %v852
      %988 = vadd.xlane.f32.xlu0 %v987
      %v989 = vpop.xlane.xlu0 %988
      %v990 = vadd.f32 %v853, %v854
      %v991 = vadd.f32 %v990, %v855
      %v992 = vadd.f32 %v991, %v856
      %993 = vadd.xlane.f32.xlu0 %v992
      %v994 = vpop.xlane.xlu0 %993
      %v995 = vadd.f32 %v857, %v858
      %v996 = vadd.f32 %v995, %v859
      %v997 = vadd.f32 %v996, %v860
      %998 = vadd.xlane.f32.xlu0 %v997
      %v999 = vpop.xlane.xlu0 %998
      %v1000 = vadd.f32 %v861, %v862
      %v1001 = vadd.f32 %v1000, %v863
      %v1002 = vadd.f32 %v1001, %v864
      %1003 = vadd.xlane.f32.xlu0 %v1002
      %v1004 = vpop.xlane.xlu0 %1003
      %v1005 = vadd.f32 %v865, %v866
      %v1006 = vadd.f32 %v1005, %v867
      %v1007 = vadd.f32 %v1006, %v868
      %1008 = vadd.xlane.f32.xlu0 %v1007
      %v1009 = vpop.xlane.xlu0 %1008
      %v1010 = vadd.f32 %v869, %v870
      %v1011 = vadd.f32 %v1010, %v871
      %v1012 = vadd.f32 %v1011, %v872
      %1013 = vadd.xlane.f32.xlu0 %v1012
      %v1014 = vpop.xlane.xlu0 %1013
      %v1015 = vadd.f32 %v873, %v874
      %v1016 = vadd.f32 %v1015, %v875
      %v1017 = vadd.f32 %v1016, %v876
      %1018 = vadd.xlane.f32.xlu0 %v1017
      %v1019 = vpop.xlane.xlu0 %1018
      %v1020 = vadd.f32 %v877, %v878
      %v1021 = vadd.f32 %v1020, %v879
      %v1022 = vadd.f32 %v1021, %v880
      %1023 = vadd.xlane.f32.xlu0 %v1022
      %v1024 = vpop.xlane.xlu0 %1023
      %v1025 = vadd.f32 %v881, %v882
      %v1026 = vadd.f32 %v1025, %v883
      %v1027 = vadd.f32 %v1026, %v884
      %1028 = vadd.xlane.f32.xlu0 %v1027
      %v1029 = vpop.xlane.xlu0 %1028
      %v1030 = vadd.f32 %v885, %v886
      %v1031 = vadd.f32 %v1030, %v887
      %v1032 = vadd.f32 %v1031, %v888
      %1033 = vadd.xlane.f32.xlu0 %v1032
      %v1034 = vpop.xlane.xlu0 %1033
      %v1035 = vadd.f32 %v889, %v890
      %v1036 = vadd.f32 %v1035, %v891
      %v1037 = vadd.f32 %v1036, %v892
      %1038 = vadd.xlane.f32.xlu0 %v1037
      %v1039 = vpop.xlane.xlu0 %1038
      %v1040 = vadd.f32 %v893, %v894
      %v1041 = vadd.f32 %v1040, %v895
      %v1042 = vadd.f32 %v1041, %v896
      %1043 = vadd.xlane.f32.xlu0 %v1042
      %v1044 = vpop.xlane.xlu0 %1043
      %v1045 = vadd.f32 %v897, %v898
      %v1046 = vadd.f32 %v1045, %v899
      %v1047 = vadd.f32 %v1046, %v900
      %1048 = vadd.xlane.f32.xlu0 %v1047
      %v1049 = vpop.xlane.xlu0 %1048
      %v1050 = vadd.f32 %v901, %v902
      %v1051 = vadd.f32 %v1050, %v903
      %v1052 = vadd.f32 %v1051, %v904
      %1053 = vadd.xlane.f32.xlu0 %v1052
      %v1054 = vpop.xlane.xlu0 %1053
      %v1055 = vadd.f32 %v905, %v906
      %v1056 = vadd.f32 %v1055, %v907
      %v1057 = vadd.f32 %v1056, %v908
      %1058 = vadd.xlane.f32.xlu0 %v1057
      %v1059 = vpop.xlane.xlu0 %1058
      %v1060 = vadd.f32 %v909, %v910
      %v1061 = vadd.f32 %v1060, %v911
      %v1062 = vadd.f32 %v1061, %v912
      %1063 = vadd.xlane.f32.xlu0 %v1062
      %v1064 = vpop.xlane.xlu0 %1063
      %v1065 = vadd.f32 %v913, %v914
      %v1066 = vadd.f32 %v1065, %v915
      %v1067 = vadd.f32 %v1066, %v916
      %1068 = vadd.xlane.f32.xlu0 %v1067
      %v1069 = vpop.xlane.xlu0 %1068
      %v1070 = vadd.f32 %v917, %v918
      %v1071 = vadd.f32 %v1070, %v919
      %v1072 = vadd.f32 %v1071, %v920
      %1073 = vadd.xlane.f32.xlu0 %v1072
      %v1074 = vpop.xlane.xlu0 %1073
      %v1075 = vadd.f32 %v921, %v922
      %v1076 = vadd.f32 %v1075, %v923
      %v1077 = vadd.f32 %v1076, %v924
      %1078 = vadd.xlane.f32.xlu0 %v1077
      %v1079 = vpop.xlane.xlu0 %1078
      %v1080 = vadd.f32 %v925, %v926
      %v1081 = vadd.f32 %v1080, %v927
      %v1082 = vadd.f32 %v1081, %v928
      %1083 = vadd.xlane.f32.xlu0 %v1082
      %v1084 = vpop.xlane.xlu0 %1083
      %v1085 = vadd.f32 %v929, %v930
      %v1086 = vadd.f32 %v1085, %v931
      %v1087 = vadd.f32 %v1086, %v932
      %1088 = vadd.xlane.f32.xlu0 %v1087
      %v1089 = vpop.xlane.xlu0 %1088
      %v1090 = vadd.f32 %v933, %v934
      %v1091 = vadd.f32 %v1090, %v935
      %v1092 = vadd.f32 %v1091, %v936
      %1093 = vadd.xlane.f32.xlu0 %v1092
      %v1094 = vpop.xlane.xlu0 %1093
      %v1095 = vadd.f32 %v937, %v938
      %v1096 = vadd.f32 %v1095, %v939
      %v1097 = vadd.f32 %v1096, %v940
      %1098 = vadd.xlane.f32.xlu0 %v1097
      %v1099 = vpop.xlane.xlu0 %1098
      %v1100 = vadd.f32 %v941, %v942
      %v1101 = vadd.f32 %v1100, %v943
      %v1102 = vadd.f32 %v1101, %v944
      %1103 = vadd.xlane.f32.xlu0 %v1102
      %v1104 = vpop.xlane.xlu0 %1103
      %v1105 = vmax.f32 %v949, 1e-24
      %v1106 = vmax.f32 %v954, 1e-24
      %v1107 = vmax.f32 %v959, 1e-24
      %v1108 = vmax.f32 %v964, 1e-24
      %v1109 = vmax.f32 %v969, 1e-24
      %v1110 = vmax.f32 %v974, 1e-24
      %v1111 = vmax.f32 %v979, 1e-24
      %v1112 = vmax.f32 %v984, 1e-24
      %v1113 = vmax.f32 %v989, 1e-24
      %v1114 = vmax.f32 %v994, 1e-24
      %v1115 = vmax.f32 %v999, 1e-24
      %v1116 = vmax.f32 %v1004, 1e-24
      %v1117 = vmax.f32 %v1009, 1e-24
      %v1118 = vmax.f32 %v1014, 1e-24
      %v1119 = vmax.f32 %v1019, 1e-24
      %v1120 = vmax.f32 %v1024, 1e-24
      %v1121 = vmax.f32 %v1029, 1e-24
      %v1122 = vmax.f32 %v1034, 1e-24
      %v1123 = vmax.f32 %v1039, 1e-24
      %v1124 = vmax.f32 %v1044, 1e-24
      %v1125 = vmax.f32 %v1049, 1e-24
      %v1126 = vmax.f32 %v1054, 1e-24
      %v1127 = vmax.f32 %v1059, 1e-24
      %v1128 = vmax.f32 %v1064, 1e-24
      %v1129 = vmax.f32 %v1069, 1e-24
      %v1130 = vmax.f32 %v1074, 1e-24
      %v1131 = vmax.f32 %v1079, 1e-24
      %v1132 = vmax.f32 %v1084, 1e-24
      %v1133 = vmax.f32 %v1089, 1e-24
      %v1134 = vmax.f32 %v1094, 1e-24
      %v1135 = vmax.f32 %v1099, 1e-24
      %v1136 = vmax.f32 %v1104, 1e-24
      %v1137 = vrsqrt.pop %v1105
      %v1138 = vrsqrt.pop %v1106
      %v1139 = vrsqrt.pop %v1107
      %v1140 = vrsqrt.pop %v1108
      %v1141 = vrsqrt.pop %v1109
      %v1142 = vrsqrt.pop %v1110
      %v1143 = vrsqrt.pop %v1111
      %v1144 = vrsqrt.pop %v1112
      %v1145 = vrsqrt.pop %v1113
      %v1146 = vrsqrt.pop %v1114
      %v1147 = vrsqrt.pop %v1115
      %v1148 = vrsqrt.pop %v1116
      %v1149 = vrsqrt.pop %v1117
      %v1150 = vrsqrt.pop %v1118
      %v1151 = vrsqrt.pop %v1119
      %v1152 = vrsqrt.pop %v1120
      %v1153 = vrsqrt.pop %v1121
      %v1154 = vrsqrt.pop %v1122
      %v1155 = vrsqrt.pop %v1123
      %v1156 = vrsqrt.pop %v1124
      %v1157 = vrsqrt.pop %v1125
      %v1158 = vrsqrt.pop %v1126
      %v1159 = vrsqrt.pop %v1127
      %v1160 = vrsqrt.pop %v1128
      %v1161 = vrsqrt.pop %v1129
      %v1162 = vrsqrt.pop %v1130
      %v1163 = vrsqrt.pop %v1131
      %v1164 = vrsqrt.pop %v1132
      %v1165 = vrsqrt.pop %v1133
      %v1166 = vrsqrt.pop %v1134
      %v1167 = vrsqrt.pop %v1135
      %v1168 = vrsqrt.pop %v1136
      %v1169 = vmul.f32 %v466, %v1137
      %v1170 = vmul.f32 %v468, %v1137
      %v1171 = vmul.f32 %v659, %v1137
      %v1172 = vmul.f32 %v661, %v1137
      %v1173 = vmul.f32 %v470, %v1138
      %v1174 = vmul.f32 %v472, %v1138
      %v1175 = vmul.f32 %v663, %v1138
      %v1176 = vmul.f32 %v665, %v1138
      %v1177 = vmul.f32 %v476, %v1139
      %v1178 = vmul.f32 %v478, %v1139
      %v1179 = vmul.f32 %v669, %v1139
      %v1180 = vmul.f32 %v671, %v1139
      %v1181 = vmul.f32 %v480, %v1140
      %v1182 = vmul.f32 %v482, %v1140
      %v1183 = vmul.f32 %v673, %v1140
      %v1184 = vmul.f32 %v675, %v1140
      %v1185 = vmul.f32 %v486, %v1141
      %v1186 = vmul.f32 %v488, %v1141
      %v1187 = vmul.f32 %v679, %v1141
      %v1188 = vmul.f32 %v681, %v1141
      %v1189 = vmul.f32 %v490, %v1142
      %v1190 = vmul.f32 %v492, %v1142
      %v1191 = vmul.f32 %v683, %v1142
      %v1192 = vmul.f32 %v685, %v1142
      %v1193 = vmul.f32 %v496, %v1143
      %v1194 = vmul.f32 %v498, %v1143
      %v1195 = vmul.f32 %v689, %v1143
      %v1196 = vmul.f32 %v691, %v1143
      %v1197 = vmul.f32 %v500, %v1144
      %v1198 = vmul.f32 %v502, %v1144
      %v1199 = vmul.f32 %v693, %v1144
      %v1200 = vmul.f32 %v695, %v1144
      %v1201 = vmul.f32 %v506, %v1145
      %v1202 = vmul.f32 %v508, %v1145
      %v1203 = vmul.f32 %v699, %v1145
      %v1204 = vmul.f32 %v701, %v1145
      %v1205 = vmul.f32 %v510, %v1146
      %v1206 = vmul.f32 %v512, %v1146
      %v1207 = vmul.f32 %v703, %v1146
      %v1208 = vmul.f32 %v705, %v1146
      %v1209 = vmul.f32 %v516, %v1147
      %v1210 = vmul.f32 %v518, %v1147
      %v1211 = vmul.f32 %v709, %v1147
      %v1212 = vmul.f32 %v711, %v1147
      %v1213 = vmul.f32 %v520, %v1148
      %v1214 = vmul.f32 %v522, %v1148
      %v1215 = vmul.f32 %v713, %v1148
      %v1216 = vmul.f32 %v715, %v1148
      %v1217 = vmul.f32 %v526, %v1149
      %v1218 = vmul.f32 %v528, %v1149
      %v1219 = vmul.f32 %v719, %v1149
      %v1220 = vmul.f32 %v721, %v1149
      %v1221 = vmul.f32 %v530, %v1150
      %v1222 = vmul.f32 %v532, %v1150
      %v1223 = vmul.f32 %v723, %v1150
      %v1224 = vmul.f32 %v725, %v1150
      %v1225 = vmul.f32 %v536, %v1151
      %v1226 = vmul.f32 %v538, %v1151
      %v1227 = vmul.f32 %v729, %v1151
      %v1228 = vmul.f32 %v731, %v1151
      %v1229 = vmul.f32 %v540, %v1152
      %v1230 = vmul.f32 %v542, %v1152
      %v1231 = vmul.f32 %v733, %v1152
      %v1232 = vmul.f32 %v735, %v1152
      %v1233 = vmul.f32 %v546, %v1153
      %v1234 = vmul.f32 %v548, %v1153
      %v1235 = vmul.f32 %v739, %v1153
      %v1236 = vmul.f32 %v741, %v1153
      %v1237 = vmul.f32 %v550, %v1154
      %v1238 = vmul.f32 %v552, %v1154
      %v1239 = vmul.f32 %v743, %v1154
      %v1240 = vmul.f32 %v745, %v1154
      %v1241 = vmul.f32 %v556, %v1155
      %v1242 = vmul.f32 %v558, %v1155
      %v1243 = vmul.f32 %v749, %v1155
      %v1244 = vmul.f32 %v751, %v1155
      %v1245 = vmul.f32 %v560, %v1156
      %v1246 = vmul.f32 %v562, %v1156
      %v1247 = vmul.f32 %v753, %v1156
      %v1248 = vmul.f32 %v755, %v1156
      %v1249 = vmul.f32 %v566, %v1157
      %v1250 = vmul.f32 %v568, %v1157
      %v1251 = vmul.f32 %v759, %v1157
      %v1252 = vmul.f32 %v761, %v1157
      %v1253 = vmul.f32 %v570, %v1158
      %v1254 = vmul.f32 %v572, %v1158
      %v1255 = vmul.f32 %v763, %v1158
      %v1256 = vmul.f32 %v765, %v1158
      %v1257 = vmul.f32 %v576, %v1159
      %v1258 = vmul.f32 %v578, %v1159
      %v1259 = vmul.f32 %v769, %v1159
      %v1260 = vmul.f32 %v771, %v1159
      %v1261 = vmul.f32 %v580, %v1160
      %v1262 = vmul.f32 %v582, %v1160
      %v1263 = vmul.f32 %v773, %v1160
      %v1264 = vmul.f32 %v775, %v1160
      %v1265 = vmul.f32 %v586, %v1161
      %v1266 = vmul.f32 %v588, %v1161
      %v1267 = vmul.f32 %v779, %v1161
      %v1268 = vmul.f32 %v781, %v1161
      %v1269 = vmul.f32 %v590, %v1162
      %v1270 = vmul.f32 %v592, %v1162
      %v1271 = vmul.f32 %v783, %v1162
      %v1272 = vmul.f32 %v785, %v1162
      %v1273 = vmul.f32 %v596, %v1163
      %v1274 = vmul.f32 %v598, %v1163
      %v1275 = vmul.f32 %v789, %v1163
      %v1276 = vmul.f32 %v791, %v1163
      %v1277 = vmul.f32 %v600, %v1164
      %v1278 = vmul.f32 %v602, %v1164
      %v1279 = vmul.f32 %v793, %v1164
      %v1280 = vmul.f32 %v795, %v1164
      %v1281 = vmul.f32 %v606, %v1165
      %v1282 = vmul.f32 %v608, %v1165
      %v1283 = vmul.f32 %v799, %v1165
      %v1284 = vmul.f32 %v801, %v1165
      %v1285 = vmul.f32 %v610, %v1166
      %v1286 = vmul.f32 %v612, %v1166
      %v1287 = vmul.f32 %v803, %v1166
      %v1288 = vmul.f32 %v805, %v1166
      %v1289 = vmul.f32 %v616, %v1167
      %v1290 = vmul.f32 %v618, %v1167
      %v1291 = vmul.f32 %v809, %v1167
      %v1292 = vmul.f32 %v811, %v1167
      %v1293 = vmul.f32 %v620, %v1168
      %v1294 = vmul.f32 %v622, %v1168
      %v1295 = vmul.f32 %v813, %v1168
      %v1296 = vmul.f32 %v815, %v1168
      %v1297 = vpack.c.bf16 %v1173, %v1169
      %v1298 = vpack.c.bf16 %v1174, %v1170
      %v1299 = vpack.c.bf16 %v1175, %v1171
      %v1300 = vpack.c.bf16 %v1176, %v1172
      %v1301 = vpack.c.bf16 %v1181, %v1177
      %v1302 = vpack.c.bf16 %v1182, %v1178
      %v1303 = vpack.c.bf16 %v1183, %v1179
      %v1304 = vpack.c.bf16 %v1184, %v1180
      %v1305 = vpack.c.bf16 %v1189, %v1185
      %v1306 = vpack.c.bf16 %v1190, %v1186
      %v1307 = vpack.c.bf16 %v1191, %v1187
      %v1308 = vpack.c.bf16 %v1192, %v1188
      %v1309 = vpack.c.bf16 %v1197, %v1193
      %v1310 = vpack.c.bf16 %v1198, %v1194
      %v1311 = vpack.c.bf16 %v1199, %v1195
      %v1312 = vpack.c.bf16 %v1200, %v1196
      %v1313 = vpack.c.bf16 %v1205, %v1201
      %v1314 = vpack.c.bf16 %v1206, %v1202
      %v1315 = vpack.c.bf16 %v1207, %v1203
      %v1316 = vpack.c.bf16 %v1208, %v1204
      %v1317 = vpack.c.bf16 %v1213, %v1209
      %v1318 = vpack.c.bf16 %v1214, %v1210
      %v1319 = vpack.c.bf16 %v1215, %v1211
      %v1320 = vpack.c.bf16 %v1216, %v1212
      %v1321 = vpack.c.bf16 %v1221, %v1217
      %v1322 = vpack.c.bf16 %v1222, %v1218
      %v1323 = vpack.c.bf16 %v1223, %v1219
      %v1324 = vpack.c.bf16 %v1224, %v1220
      %v1325 = vpack.c.bf16 %v1229, %v1225
      %v1326 = vpack.c.bf16 %v1230, %v1226
      %v1327 = vpack.c.bf16 %v1231, %v1227
      %v1328 = vpack.c.bf16 %v1232, %v1228
      %v1329 = vpack.c.bf16 %v1237, %v1233
      %v1330 = vpack.c.bf16 %v1238, %v1234
      %v1331 = vpack.c.bf16 %v1239, %v1235
      %v1332 = vpack.c.bf16 %v1240, %v1236
      %v1333 = vpack.c.bf16 %v1245, %v1241
      %v1334 = vpack.c.bf16 %v1246, %v1242
      %v1335 = vpack.c.bf16 %v1247, %v1243
      %v1336 = vpack.c.bf16 %v1248, %v1244
      %v1337 = vpack.c.bf16 %v1253, %v1249
      %v1338 = vpack.c.bf16 %v1254, %v1250
      %v1339 = vpack.c.bf16 %v1255, %v1251
      %v1340 = vpack.c.bf16 %v1256, %v1252
      %v1341 = vpack.c.bf16 %v1261, %v1257
      %v1342 = vpack.c.bf16 %v1262, %v1258
      %v1343 = vpack.c.bf16 %v1263, %v1259
      %v1344 = vpack.c.bf16 %v1264, %v1260
      %v1345 = vpack.c.bf16 %v1269, %v1265
      %v1346 = vpack.c.bf16 %v1270, %v1266
      %v1347 = vpack.c.bf16 %v1271, %v1267
      %v1348 = vpack.c.bf16 %v1272, %v1268
      %v1349 = vpack.c.bf16 %v1277, %v1273
      %v1350 = vpack.c.bf16 %v1278, %v1274
      %v1351 = vpack.c.bf16 %v1279, %v1275
      %v1352 = vpack.c.bf16 %v1280, %v1276
      %v1353 = vpack.c.bf16 %v1285, %v1281
      %v1354 = vpack.c.bf16 %v1286, %v1282
      %v1355 = vpack.c.bf16 %v1287, %v1283
      %v1356 = vpack.c.bf16 %v1288, %v1284
      %v1357 = vpack.c.bf16 %v1293, %v1289
      %v1358 = vpack.c.bf16 %v1294, %v1290
      %v1359 = vpack.c.bf16 %v1295, %v1291
      %v1360 = vpack.c.bf16 %v1296, %v1292
      %v1361 = vld [vmem:[%s3] sm:$0xff]
      %v1362 = vld [vmem:[%s3 + $0x8] sm:$0xff]
      %v1363 = vld [vmem:[%s5] sm:$0xff]
      %1365 = vset.pattern.permute.xlu0 0
      %1366 = vperm.xlu0 %1365, %v1363
      %v1367 = vpop.permute.xlu0 %1366
      %v1371 = vunpack.c.l.b16 %v1361
      %v1372 = vunpack.c.h.b16 %v1361
      %v1373 = vunpack.c.l.b16 %v1362
      %v1374 = vunpack.c.h.b16 %v1362
      %v1375 = vpack.c.b16 %v1371, %v1371
      %v1376 = vpack.c.b16 %v1372, %v1372
      %v1377 = vpack.c.b16 %v1373, %v1373
      %v1378 = vpack.c.b16 %v1374, %v1374
      %1383 = vmatprep.subr.bf16.mxu0 %v1298
      %1384 = vmatpush1.bf16.xpose.msra.mxu0 %v1297
      %1385 = vmatprep.subr.bf16.mxu0 %v1302
      %1386 = vmatpush1.bf16.xpose.msra.mxu0 %v1301
      %1387 = vmatprep.subr.bf16.mxu0 %v1306
      %1388 = vmatpush1.bf16.xpose.msra.mxu0 %v1305
      %1389 = vmatprep.subr.bf16.mxu0 %v1310
      %1390 = vmatpush1.bf16.xpose.msra.mxu0 %v1309
      %1391 = vmatprep.subr.bf16.mxu0 %v1314
      %1392 = vmatpush1.bf16.xpose.msra.mxu0 %v1313
      %1393 = vmatprep.subr.bf16.mxu0 %v1318
      %1394 = vmatpush1.bf16.xpose.msra.mxu0 %v1317
      %1395 = vmatprep.subr.bf16.mxu0 %v1322
      %1396 = vmatpush1.bf16.xpose.msra.mxu0 %v1321
      %1397 = vmatprep.subr.bf16.mxu0 %v1326
      %1398 = vmatpush1.bf16.xpose.msra.mxu0 %v1325
      %1399 = vmatprep.subr.bf16.mxu0 %v1330
      %1400 = vmatpush1.bf16.xpose.msra.mxu0 %v1329
      %1401 = vmatprep.subr.bf16.mxu0 %v1334
      %1402 = vmatpush1.bf16.xpose.msra.mxu0 %v1333
      %1403 = vmatprep.subr.bf16.mxu0 %v1338
      %1404 = vmatpush1.bf16.xpose.msra.mxu0 %v1337
      %1405 = vmatprep.subr.bf16.mxu0 %v1342
      %1406 = vmatpush1.bf16.xpose.msra.mxu0 %v1341
      %1407 = vmatprep.subr.bf16.mxu0 %v1346
      %1408 = vmatpush1.bf16.xpose.msra.mxu0 %v1345
      %1409 = vmatprep.subr.bf16.mxu0 %v1350
      %1410 = vmatpush1.bf16.xpose.msra.mxu0 %v1349
      %1411 = vmatprep.subr.bf16.mxu0 %v1354
      %1412 = vmatpush1.bf16.xpose.msra.mxu0 %v1353
      %1413 = vmatprep.subr.bf16.mxu0 %v1358
      %1414 = vmatpush1.bf16.xpose.msra.mxu0 %v1357
      %1415 = vmatprep.mubr.bf16.mxu0 %v1376
      %1416 = vmatmul.mubr.bf16.gmra.mrb[0].mxu0 %v1375
      %v1417 = vpop.f32.mrb[0].mxu0
      %v1418 = vadd.f32 %v1367, %v1417
      %v1419 = vpop.f32.mrb[0].mxu0
      %v1420 = vadd.f32 %v1367, %v1419
      %v1421 = vpop.f32.mrb[0].mxu0
      %v1422 = vpop.f32.mrb[0].mxu0
      %1423 = vdwg.mxu0
      %1424 = vmatprep.subr.bf16.mxu0 %v1300
      %1425 = vmatpush1.bf16.xpose.msra.mxu0 %v1299
      %1426 = vmatprep.subr.bf16.mxu0 %v1304
      %1427 = vmatpush1.bf16.xpose.msra.mxu0 %v1303
      %1428 = vmatprep.subr.bf16.mxu0 %v1308
      %1429 = vmatpush1.bf16.xpose.msra.mxu0 %v1307
      %1430 = vmatprep.subr.bf16.mxu0 %v1312
      %1431 = vmatpush1.bf16.xpose.msra.mxu0 %v1311
      %1432 = vmatprep.subr.bf16.mxu0 %v1316
      %1433 = vmatpush1.bf16.xpose.msra.mxu0 %v1315
      %1434 = vmatprep.subr.bf16.mxu0 %v1320
      %1435 = vmatpush1.bf16.xpose.msra.mxu0 %v1319
      %1436 = vmatprep.subr.bf16.mxu0 %v1324
      %1437 = vmatpush1.bf16.xpose.msra.mxu0 %v1323
      %1438 = vmatprep.subr.bf16.mxu0 %v1328
      %1439 = vmatpush1.bf16.xpose.msra.mxu0 %v1327
      %1440 = vmatprep.subr.bf16.mxu0 %v1332
      %1441 = vmatpush1.bf16.xpose.msra.mxu0 %v1331
      %1442 = vmatprep.subr.bf16.mxu0 %v1336
      %1443 = vmatpush1.bf16.xpose.msra.mxu0 %v1335
      %1444 = vmatprep.subr.bf16.mxu0 %v1340
      %1445 = vmatpush1.bf16.xpose.msra.mxu0 %v1339
      %1446 = vmatprep.subr.bf16.mxu0 %v1344
      %1447 = vmatpush1.bf16.xpose.msra.mxu0 %v1343
      %1448 = vmatprep.subr.bf16.mxu0 %v1348
      %1449 = vmatpush1.bf16.xpose.msra.mxu0 %v1347
      %1450 = vmatprep.subr.bf16.mxu0 %v1352
      %1451 = vmatpush1.bf16.xpose.msra.mxu0 %v1351
      %1452 = vmatprep.subr.bf16.mxu0 %v1356
      %1453 = vmatpush1.bf16.xpose.msra.mxu0 %v1355
      %1454 = vmatprep.subr.bf16.mxu0 %v1360
      %1455 = vmatpush1.bf16.xpose.msra.mxu0 %v1359
      %1456 = vmatprep.mubr.bf16.mxu0 %v1378
      %1457 = vmatmul.mubr.bf16.gmra.mrb[0].mxu0 %v1377
      %v1458 = vpop.f32.mrb[0].mxu0
      %v1459 = vadd.f32 %v1418, %v1458
      %v1460 = vpop.f32.mrb[0].mxu0
      %v1461 = vadd.f32 %v1420, %v1460
      %v1462 = vpop.f32.mrb[0].mxu0
      %v1463 = vpop.f32.mrb[0].mxu0
      %1464 = vdwg.mxu0
      %v1465 = vrot.slane %v1459, 4
      %v1466 = vmax.f32 %v1459, %v1465
      %v1467 = vrot.slane %v1466, 2
      %v1468 = vmax.f32 %v1466, %v1467
      %v1469 = vrot.slane %v1468, 1
      %v1470 = vmax.f32 %v1468, %v1469
      %v1471 = vrot.slane %v1461, 4
      %v1472 = vmax.f32 %v1461, %v1471
      %v1473 = vrot.slane %v1472, 2
      %v1474 = vmax.f32 %v1472, %v1473
      %v1475 = vrot.slane %v1474, 1
      %v1476 = vmax.f32 %v1474, %v1475
      %v1477 = vsub.f32 %v1459, %v1470
      %v1478 = vsub.f32 %v1461, %v1476
      %v1479 = vmul.f32 %v1477, 1.442695
      %v1480 = vpow.pop %v1479
      %v1481 = vmul.f32 %v1478, 1.442695
      %v1482 = vpow.pop %v1481
      %v1483 = vrot.slane %v1480, 4
      %v1484 = vadd.f32 %v1480, %v1483
      %v1485 = vrot.slane %v1484, 2
      %v1486 = vadd.f32 %v1484, %v1485
      %v1487 = vrot.slane %v1486, 1
      %v1488 = vadd.f32 %v1486, %v1487
      %v1489 = vrot.slane %v1482, 4
      %v1490 = vadd.f32 %v1482, %v1489
      %v1491 = vrot.slane %v1490, 2
      %v1492 = vadd.f32 %v1490, %v1491
      %v1493 = vrot.slane %v1492, 1
      %v1494 = vadd.f32 %v1492, %v1493
      %v1495 = vrcp.pop %v1488
      %v1496 = vrcp.pop %v1494
      %v1497 = vmul.f32 %v1480, %v1495
      %v1498 = vmul.f32 %v1482, %v1496
      %v1499 = vld [vmem:[#allocation2] sm:$0xff]
      %v1500 = vld [vmem:[#allocation2 + $0x8] sm:$0xff]
      %v1501 = vld [vmem:[#allocation2 + $0x10] sm:$0xff]
      %v1502 = vld [vmem:[#allocation2 + $0x18] sm:$0xff]
      %v1503 = vpack.c.bf16 %v1497, %v1497
      %v1504 = vpack.c.bf16 %v1498, %v1498
      %1505 = vmatprep.subr.bf16.mxu0 %v1298
      %1506 = vmatpush1.bf16.msra.mxu0 %v1297
      %1507 = vmatprep.subr.bf16.mxu0 %v1302
      %1508 = vmatpush1.bf16.msra.mxu0 %v1301
      %1509 = vmatprep.subr.bf16.mxu0 %v1306
      %1510 = vmatpush1.bf16.msra.mxu0 %v1305
      %1511 = vmatprep.subr.bf16.mxu0 %v1310
      %1512 = vmatpush1.bf16.msra.mxu0 %v1309
      %1513 = vmatprep.subr.bf16.mxu0 %v1314
      %1514 = vmatpush1.bf16.msra.mxu0 %v1313
      %1515 = vmatprep.subr.bf16.mxu0 %v1318
      %1516 = vmatpush1.bf16.msra.mxu0 %v1317
      %1517 = vmatprep.subr.bf16.mxu0 %v1322
      %1518 = vmatpush1.bf16.msra.mxu0 %v1321
      %1519 = vmatprep.subr.bf16.mxu0 %v1326
      %1520 = vmatpush1.bf16.msra.mxu0 %v1325
      %1521 = vmatprep.subr.bf16.mxu0 %v1330
      %1522 = vmatpush1.bf16.msra.mxu0 %v1329
      %1523 = vmatprep.subr.bf16.mxu0 %v1334
      %1524 = vmatpush1.bf16.msra.mxu0 %v1333
      %1525 = vmatprep.subr.bf16.mxu0 %v1338
      %1526 = vmatpush1.bf16.msra.mxu0 %v1337
      %1527 = vmatprep.subr.bf16.mxu0 %v1342
      %1528 = vmatpush1.bf16.msra.mxu0 %v1341
      %1529 = vmatprep.subr.bf16.mxu0 %v1346
      %1530 = vmatpush1.bf16.msra.mxu0 %v1345
      %1531 = vmatprep.subr.bf16.mxu0 %v1350
      %1532 = vmatpush1.bf16.msra.mxu0 %v1349
      %1533 = vmatprep.subr.bf16.mxu0 %v1354
      %1534 = vmatpush1.bf16.msra.mxu0 %v1353
      %1535 = vmatprep.subr.bf16.mxu0 %v1358
      %1536 = vmatpush1.bf16.msra.mxu0 %v1357
      %1537 = vmatprep.mubr.bf16.mxu0 %v1504
      %1538 = vmatmul.mubr.bf16.gmra.mrb[0].mxu0 %v1503
      %v1539 = vpop.f32.mrb[0].mxu0
      %v1540 = vadd.f32 0.0, %v1539
      %v1541 = vpop.f32.mrb[0].mxu0
      %v1542 = vadd.f32 0.0, %v1541
      %v1543 = vpop.f32.mrb[0].mxu0
      %v1544 = vpop.f32.mrb[0].mxu0
      %1545 = vdwg.mxu0
      %1546 = vmatprep.subr.bf16.mxu0 %v1300
      %1547 = vmatpush1.bf16.msra.mxu0 %v1299
      %1548 = vmatprep.subr.bf16.mxu0 %v1304
      %1549 = vmatpush1.bf16.msra.mxu0 %v1303
      %1550 = vmatprep.subr.bf16.mxu0 %v1308
      %1551 = vmatpush1.bf16.msra.mxu0 %v1307
      %1552 = vmatprep.subr.bf16.mxu0 %v1312
      %1553 = vmatpush1.bf16.msra.mxu0 %v1311
      %1554 = vmatprep.subr.bf16.mxu0 %v1316
      %1555 = vmatpush1.bf16.msra.mxu0 %v1315
      %1556 = vmatprep.subr.bf16.mxu0 %v1320
      %1557 = vmatpush1.bf16.msra.mxu0 %v1319
      %1558 = vmatprep.subr.bf16.mxu0 %v1324
      %1559 = vmatpush1.bf16.msra.mxu0 %v1323
      %1560 = vmatprep.subr.bf16.mxu0 %v1328
      %1561 = vmatpush1.bf16.msra.mxu0 %v1327
      %1562 = vmatprep.subr.bf16.mxu0 %v1332
      %1563 = vmatpush1.bf16.msra.mxu0 %v1331
      %1564 = vmatprep.subr.bf16.mxu0 %v1336
      %1565 = vmatpush1.bf16.msra.mxu0 %v1335
      %1566 = vmatprep.subr.bf16.mxu0 %v1340
      %1567 = vmatpush1.bf16.msra.mxu0 %v1339
      %1568 = vmatprep.subr.bf16.mxu0 %v1344
      %1569 = vmatpush1.bf16.msra.mxu0 %v1343
      %1570 = vmatprep.subr.bf16.mxu0 %v1348
      %1571 = vmatpush1.bf16.msra.mxu0 %v1347
      %1572 = vmatprep.subr.bf16.mxu0 %v1352
      %1573 = vmatpush1.bf16.msra.mxu0 %v1351
      %1574 = vmatprep.subr.bf16.mxu0 %v1356
      %1575 = vmatpush1.bf16.msra.mxu0 %v1355
      %1576 = vmatprep.subr.bf16.mxu0 %v1360
      %1577 = vmatpush1.bf16.msra.mxu0 %v1359
      %1578 = vmatprep.mubr.bf16.mxu0 %v1504
      %1579 = vmatmul.mubr.bf16.gmra.mrb[0].mxu0 %v1503
      %v1580 = vpop.f32.mrb[0].mxu0
      %v1581 = vadd.f32 0.0, %v1580
      %v1582 = vpop.f32.mrb[0].mxu0
      %v1583 = vadd.f32 0.0, %v1582
      %v1584 = vpop.f32.mrb[0].mxu0
      %v1585 = vpop.f32.mrb[0].mxu0
      %1586 = vdwg.mxu0
      %v1587 = vadd.f32 %v1499, %v1540
      %v1588 = vadd.f32 %v1500, %v1542
      %v1589 = vadd.f32 %v1501, %v1581
      %v1590 = vadd.f32 %v1502, %v1583
      %1591 = vst [vmem:[#allocation2] sm:$0xff] %v1587
      %1592 = vst [vmem:[#allocation2 + $0x8] sm:$0xff] %v1588
      %1593 = vst [vmem:[#allocation2 + $0x10] sm:$0xff] %v1589
      %1594 = vst [vmem:[#allocation2 + $0x18] sm:$0xff] %v1590
      %v1595 = vld [vmem:[#allocation3] sm:$0xff]
      %v1596 = vadd.f32 %v1497, %v1498
      %1597 = vadd.xlane.f32.xlu0 %v1596
      %v1598 = vpop.xlane.xlu0 %1597
      %v1599 = vadd.f32 %v1595, %v1598
      %1600 = vst [vmem:[#allocation3] sm:$0xff] %v1599
      // Predicated region
      $region49: #{netvlad_forward.1} parent=43 // pred_check
        %p1601 = pneg %p281
      $region50: #{netvlad_forward.1} parent=43 // pred_check_branch
        %1603 = sbr.rel (%p1601) target = $region52
      $region51: #{netvlad_forward.1} parent=43 // pred_region
        %v1604 = vld [vmem:[#allocation3] sm:$0xff]
        %v1605 = vld [vmem:[#allocation2] sm:$0xff]
        %v1606 = vld [vmem:[#allocation2 + $0x8] sm:$0xff]
        %v1607 = vld [vmem:[#allocation2 + $0x10] sm:$0xff]
        %v1608 = vld [vmem:[#allocation2 + $0x18] sm:$0xff]
        %v1609 = vld [vmem:[%s4] sm:$0xff]
        %v1610 = vld [vmem:[%s4 + $0x8] sm:$0xff]
        %v1611 = vld [vmem:[%s4 + $0x10] sm:$0xff]
        %v1612 = vld [vmem:[%s4 + $0x18] sm:$0xff]
        %1614 = vset.pattern.permute.xlu0 0
        %1615 = vperm.xlu0 %1614, %v1604
        %v1616 = vpop.permute.xlu0 %1615
        %v1618 = vmul.f32 %v1609, %v1616
        %v1619 = vmul.f32 %v1610, %v1616
        %v1620 = vmul.f32 %v1611, %v1616
        %v1621 = vmul.f32 %v1612, %v1616
        %v1622 = vsub.f32 %v1605, %v1618
        %v1623 = vsub.f32 %v1606, %v1619
        %v1624 = vsub.f32 %v1607, %v1620
        %v1625 = vsub.f32 %v1608, %v1621
        %v1626 = vmul.f32 %v1622, %v1622
        %v1627 = vmul.f32 %v1623, %v1623
        %v1628 = vmul.f32 %v1624, %v1624
        %v1629 = vmul.f32 %v1625, %v1625
        %v1630 = vadd.f32 %v1626, %v1627
        %v1631 = vadd.f32 %v1630, %v1628
        %v1632 = vadd.f32 %v1631, %v1629
        %1633 = vadd.xlane.f32.xlu0 %v1632
        %v1634 = vpop.xlane.xlu0 %1633
        %v1635 = vmax.f32 %v1634, 1e-24
        %v1636 = vrsqrt.pop %v1635
        %v1637 = vmul.f32 %v1622, %v1636
        %v1638 = vmul.f32 %v1623, %v1636
        %v1639 = vmul.f32 %v1624, %v1636
        %v1640 = vmul.f32 %v1625, %v1636
        %v1641 = vmul.f32 %v1637, %v1637
        %v1642 = vmul.f32 %v1638, %v1638
        %v1643 = vmul.f32 %v1639, %v1639
        %v1644 = vmul.f32 %v1640, %v1640
        %v1645 = vadd.f32 %v1641, %v1642
        %v1646 = vadd.f32 %v1645, %v1643
        %v1647 = vadd.f32 %v1646, %v1644
        %1648 = vadd.xlane.f32.xlu0 %v1647
        %v1649 = vpop.xlane.xlu0 %1648
        %v1650 = vrot.slane %v1649, 4
        %v1651 = vadd.f32 %v1649, %v1650
        %v1652 = vrot.slane %v1651, 2
        %v1653 = vadd.f32 %v1651, %v1652
        %v1654 = vrot.slane %v1653, 1
        %v1655 = vadd.f32 %v1653, %v1654
        %s1656 = vtos %v1655
        %s1657 = smax.f32 %s1656, 1e-24
        %v1658 = vstv %s1657
        %v1659 = vrsqrt.pop %v1658
        %s1660 = vtos %v1659
        %v1661 = vstv %s1660
        %v1662 = vmul.f32 %v1637, %v1661
        %v1663 = vmul.f32 %v1638, %v1661
        %v1664 = vmul.f32 %v1639, %v1661
        %v1665 = vmul.f32 %v1640, %v1661
        %1666 = vst [vmem:[%s279] sm:$0xff] %v1662
        %1667 = vst [vmem:[%s279 + $0x8] sm:$0xff] %v1663
        %1668 = vst [vmem:[%s279 + $0x10] sm:$0xff] %v1664
        %1669 = vst [vmem:[%s279 + $0x18] sm:$0xff] %v1665
      $region52: #{netvlad_forward.1} parent=43 // pred_fallthru
        _
      %p1670 = scmp.lt.s32.totalorder %s21, 1
      %s1671 = scalar_select %p1670, %s21, 1
      %s1672 = smul.addr %s1671, 4
      %s1673 = smul.addr %s1672, 8
      %s1674 = scalar_lea.vmem %s6, %s1673
      // Predicated region
      $region53: #{netvlad_forward.1} parent=43 // pred_check
        %p1675 = pneg %p180
      $region54: #{netvlad_forward.1} parent=43 // pred_check_branch
        %1677 = sbr.rel (%p1675) target = $region56
      $region55: #{netvlad_forward.1} parent=43 // pred_region
        _
      $region56: #{netvlad_forward.1} parent=43 // pred_fallthru
        _
    $region44: #{netvlad_forward.1} parent=5 // pred_fallthru
      _
    %p1678 = scmp.le.s32.totalorder 2, %s12
    // Predicated region
    $region57: #{netvlad_forward.1} parent=5 // pred_check
      %p1679 = pneg %p1678
    $region58: #{netvlad_forward.1} parent=5 // pred_check_branch
      %1681 = sbr.rel (%p1679) target = $region60
    $region59: #{netvlad_forward.1} parent=5 // pred_region
      %s1682 = ssub.s32 %s12, 2
      // Predicated region
      $region61: #{netvlad_forward.1} parent=59 // pred_check
        %p1683 = pneg %p186
      $region62: #{netvlad_forward.1} parent=59 // pred_check_branch
        %1685 = sbr.rel (%p1683) target = $region64
      $region63: #{netvlad_forward.1} parent=59 // pred_region
        %p1686 = scmp.lt.s32.totalorder %s23, 1
        %s1687 = scalar_select %p1686, %s23, 1
        %s1688 = smul.addr %s1687, 4
        %s1689 = smul.addr %s1688, 8
        %s1690 = scalar_lea.vmem %s6, %s1689
      $region64: #{netvlad_forward.1} parent=59 // pred_fallthru
        _
    $region60: #{netvlad_forward.1} parent=5 // pred_fallthru
      _
  $region6: #{netvlad_forward.1} parent=0 // loop_footer
    %s16 = sadd.s32 1, %s12
  $region7: #{netvlad_forward.1} parent=0 // loop_footer_branch
    %11 = sbr.rel target = $region3
  $region8: #{netvlad_forward.1} parent=0 // loop_exit
    _

</llo_original>
